<compile_context>
chip_gen: v7x
topology: tpu7x:2x2x1
jax: 0.10.0
libtpu: 0.0.40
codegen_flags: <defaults>
</compile_context>

<pallas_src>
import functools

import jax
import jax.numpy as jnp
from jax.experimental import pallas as pl
from jax.experimental.pallas import tpu as pltpu


@functools.lru_cache(maxsize=None)
def _vmem_limit_bytes():
    """Generation-aware scoped-VMEM limit (safe fallback if query fails)."""
    default = 64 * 1024 * 1024
    try:
        cap = int(pltpu.get_tpu_info().vmem_capacity_bytes)
    except Exception:
        return default
    if cap <= 64 * 1024 * 1024:        # v7x-class (64 MiB physical per TC)
        return 48 * 1024 * 1024        # leave compiler-scratch headroom
    return 96 * 1024 * 1024            # v5e / v6e (128 MiB physical)


def _pick_tile(mh, cap=4096):
    """Largest row tile (mult. of 8, <= cap) giving >=4 grid steps (>=2 fallback)."""
    for steps in (4, 2):
        t = min(cap, (mh // steps) // 8 * 8)
        if t >= 8:
            return t
    return 8


# ---------------------------------------------------------------------------
# Kernel A: fused (X @ W) * scale + bias, ReLU.
#   X:[tm,K] bf16, W:[K,N] bf16, scale/bias:[1,N] f32, out:[tm,N] bf16,
#   N a multiple of 128 (lane-dense stores), f32 MXU accumulation.
# ---------------------------------------------------------------------------
def _gemm_affine_relu_kernel(x_ref, w_ref, s_ref, b_ref, o_ref):
    acc = jnp.dot(x_ref[...], w_ref[...], preferred_element_type=jnp.float32)
    o_ref[...] = jnp.maximum(acc * s_ref[...] + b_ref[...], 0.0).astype(o_ref.dtype)


def _gemm_affine_relu(x, w, scale, bias, *, tm):
    Mh, K = x.shape
    Kw, N = w.shape
    assert K == Kw and Mh % tm == 0 and N % 128 == 0
    return pl.pallas_call(
        _gemm_affine_relu_kernel,
        out_shape=jax.ShapeDtypeStruct((Mh, N), jnp.bfloat16),
        grid_spec=pltpu.PrefetchScalarGridSpec(
            num_scalar_prefetch=0,
            grid=(Mh // tm,),
            in_specs=[
                pl.BlockSpec((tm, K), lambda i: (i, 0)),
                pl.BlockSpec((K, N), lambda i: (0, 0)),
                pl.BlockSpec((1, N), lambda i: (0, 0)),
                pl.BlockSpec((1, N), lambda i: (0, 0)),
            ],
            out_specs=pl.BlockSpec((tm, N), lambda i: (i, 0)),
        ),
        compiler_params=pltpu.CompilerParams(
            dimension_semantics=("parallel",),
            vmem_limit_bytes=_vmem_limit_bytes()),
    )(x, w, scale, bias)


# ---------------------------------------------------------------------------
# Kernel B: stride-2 3x3 conv + BN + ReLU  ->  2x2 stride-2 transpose conv
# + BN + ReLU, fully fused, one batch element per grid step.
#
#   fh_ref : (Ho+1, 2, Wo+1, 128) bf16  pair-packed padded feature map:
#            element (r, p, q, l) == padded_NHWC[2r+p, 2q + l//64, l%64]
#   w2_ref : (3, 256, 64) bf16  row tap i -> [W2[i,0]; W2[i,1]; W2[i,2]; 0]
#   wt_ref : (64, 256) bf16     transpose-conv weight, cols ordered (dh,dw,cout)
#   o_ref  : (Ho, 2, Wo, 128) bf16 — (ho, dh, wo, dw*64+c), a byte-exact
#            reinterpretation of the (2Ho, 2Wo, 64) NHWC result.
# ---------------------------------------------------------------------------
def _half_and_up_kernel(fh_ref, w2_ref, s2_ref, b2_ref,
                        wt_ref, st_ref, bt_ref, o_ref, *, ho, wo):
    m = ho * wo
    acc = jnp.zeros((m, 64), jnp.float32)
    # Stride-2 conv: padded row 2*ho+i lives at (row-pair ho + i//2, parity i%2);
    # both packed column windows are concatenated into one K=256 dot per row tap
    # (column-tap selection folded into the packed weight).
    for i in range(3):
        ri, rp = i // 2, i % 2
        win0 = fh_ref[ri:ri + ho, rp, 0:wo, :]          # (ho, wo, 128): col taps 0,1
        win1 = fh_ref[ri:ri + ho, rp, 1:1 + wo, :]      # (ho, wo, 128): col tap 2, junk
        win = jnp.concatenate([win0, win1], axis=-1).reshape(m, 256)
        acc = acc + jnp.dot(win, w2_ref[i], preferred_element_type=jnp.float32)
    h2 = jnp.maximum(acc * s2_ref[...] + b2_ref[...], 0.0).astype(jnp.bfloat16)

    # Fused 2x-upsample transpose conv + BN + ReLU; N=256 output is lane-dense.
    y = jnp.dot(h2, wt_ref[...], preferred_element_type=jnp.float32)
    y = jnp.maximum(y * st_ref[...] + bt_ref[...], 0.0)
    o_ref[:, 0, :, :] = y[:, 0:128].reshape(ho, wo, 128).astype(o_ref.dtype)
    o_ref[:, 1, :, :] = y[:, 128:256].reshape(ho, wo, 128).astype(o_ref.dtype)


def _half_and_up(fh_poly, w2pk, s2, b2, wt, st, bt, *, batch, ho, wo):
    kern = functools.partial(_half_and_up_kernel, ho=ho, wo=wo)
    return pl.pallas_call(
        kern,
        out_shape=jax.ShapeDtypeStruct((batch * ho, 2, wo, 128), jnp.bfloat16),
        grid_spec=pltpu.PrefetchScalarGridSpec(
            num_scalar_prefetch=0,
            grid=(batch,),
            in_specs=[
                pl.BlockSpec((ho + 1, 2, wo + 1, 128), lambda b: (b, 0, 0, 0)),
                pl.BlockSpec((3, 256, 64), lambda b: (0, 0, 0)),
                pl.BlockSpec((1, 64), lambda b: (0, 0)),
                pl.BlockSpec((1, 64), lambda b: (0, 0)),
                pl.BlockSpec((64, 256), lambda b: (0, 0)),
                pl.BlockSpec((1, 256), lambda b: (0, 0)),
                pl.BlockSpec((1, 256), lambda b: (0, 0)),
            ],
            out_specs=pl.BlockSpec((ho, 2, wo, 128), lambda b: (b, 0, 0, 0)),
        ),
        compiler_params=pltpu.CompilerParams(
            dimension_semantics=("parallel",),
            vmem_limit_bytes=_vmem_limit_bytes()),
    )(fh_poly, w2pk, s2, b2, wt, st, bt)


# ---------------------------------------------------------------------------
# Parameters (kaiming_normal fan_out, eval-mode BN folded into scale/bias),
# pre-packed into the layouts the kernels consume.
# ---------------------------------------------------------------------------
def make_params(key):
    def kaiming(k, shape, fan_out):
        return ((2.0 / fan_out) ** 0.5) * jax.random.normal(k, shape, jnp.float32)

    k1, k2, k3 = jax.random.split(key, 3)
    eps = 1e-5
    scale = jnp.ones((64,), jnp.float32) / jnp.sqrt(1.0 + eps)  # gamma/sqrt(var+eps)
    bias = jnp.zeros((64,), jnp.float32)                        # beta - mean*scale

    # conv1: OIHW (64,3,3,3) -> (27,64) rows ordered (i,j,cin); pad K to 32;
    # block-diagonal (64,128) so a row PAIR of im2col maps to 128 output lanes.
    w1 = kaiming(k1, (64, 3, 3, 3), 64 * 9)
    w1m = jnp.transpose(w1, (2, 3, 1, 0)).reshape(27, 64)
    w1p = jnp.pad(w1m, ((0, 5), (0, 0)))                        # (32, 64)
    z = jnp.zeros((32, 64), jnp.float32)
    w1b = jnp.concatenate(
        [jnp.concatenate([w1p, z], axis=1),
         jnp.concatenate([z, w1p], axis=1)], axis=0)            # (64, 128)

    # conv2: OIHW (64,64,3,3) -> taps (i,j) as (cin,cout); pack all 3 column
    # taps (plus a zero block) into one K=256 weight per row tap.
    w2 = kaiming(k2, (64, 64, 3, 3), 64 * 9)
    w2t = jnp.transpose(w2, (2, 3, 1, 0))                       # (3,3,64,64)
    w2pk = jnp.concatenate(
        [w2t[:, 0], w2t[:, 1], w2t[:, 2],
         jnp.zeros((3, 64, 64), jnp.float32)], axis=1)          # (3,256,64)

    # transpose conv: (Cin,Cout,2,2) -> (64,256), columns ordered (dh,dw,cout).
    wt = kaiming(k3, (64, 64, 2, 2), 64 * 4)
    wtm = jnp.transpose(wt, (0, 2, 3, 1)).reshape(64, 256)

    return {
        "w1b": w1b.astype(jnp.bfloat16),
        "s1": jnp.tile(scale, 2).reshape(1, 128),
        "b1": jnp.tile(bias, 2).reshape(1, 128),
        "w2pk": w2pk.astype(jnp.bfloat16),
        "s2": scale.reshape(1, 64),
        "b2": bias.reshape(1, 64),
        "wt": wtm.astype(jnp.bfloat16),
        "st": jnp.tile(scale, 4).reshape(1, 256),
        "bt": jnp.tile(bias, 4).reshape(1, 256),
    }


# ---------------------------------------------------------------------------
# Forward pass equivalent of LowResolutionBranch.forward (NCHW in / NCHW out).
# ---------------------------------------------------------------------------
@jax.jit
def low_resolution_branch(x_nchw, params):
    B, Cin, H, W = x_nchw.shape
    assert Cin == 3 and H % 2 == 0 and W % 2 == 0, "expects RGB, even H/W"
    Ho, Wo = H // 2, W // 2

    x = jnp.transpose(x_nchw, (0, 2, 3, 1)).astype(jnp.bfloat16)      # NHWC

    # --- conv1 + BN + ReLU (Kernel A) --------------------------------------
    xp = jnp.pad(x, ((0, 0), (1, 1), (1, 1), (0, 0)))
    slabs = [xp[:, i:i + H, j:j + W, :] for i in range(3) for j in range(3)]
    slabs.append(jnp.zeros((B, H, W, 5), jnp.bfloat16))               # fused K pad 27->32
    cols = jnp.concatenate(slabs, axis=-1)                            # (B,H,W,32)
    M = B * H * W
    Mh = M // 2                                                       # row pairs
    x2 = cols.reshape(Mh, 64)                                         # free reshape
    tm = _pick_tile(Mh)
    Mh_pad = -(-Mh // tm) * tm
    x2 = jnp.pad(x2, ((0, Mh_pad - Mh), (0, 0)))

    h1 = _gemm_affine_relu(x2, params["w1b"], params["s1"], params["b1"], tm=tm)
    feat_high = h1.reshape(2 * Mh_pad, 64)[:M].reshape(B, H, W, 64)   # bf16 NHWC

    # --- conv2 (s2) + BN + ReLU  fused with  TranConv + BN + ReLU (Kernel B)
    fh = jnp.pad(feat_high, ((0, 0), (1, 1), (1, 1), (0, 0)))         # (B,H+2,W+2,64)
    # pair-packed polyphase view: pure row-major reshape (no data movement)
    fh_poly = fh.reshape(B * (Ho + 1), 2, Wo + 1, 128)

    y = _half_and_up(fh_poly, params["w2pk"], params["s2"], params["b2"],
                     params["wt"], params["st"], params["bt"],
                     batch=B, ho=Ho, wo=Wo)
    feature_map = y.reshape(B, H, W, 64)                              # free reshape, bf16

    # back to NCHW (PyTorch convention); f32 upcast fused into the transposes.
    return (jnp.transpose(feature_map, (0, 3, 1, 2)).astype(jnp.float32),
            jnp.transpose(feat_high, (0, 3, 1, 2)).astype(jnp.float32))


if __name__ == "__main__":
    key = jax.random.PRNGKey(0)
    kx, kp = jax.random.split(key)
    x = jax.random.normal(kx, (2, 3, 16, 16), dtype=jnp.float32)      # NCHW RGB
    params = make_params(kp)

    feature_map, feature_map_high = low_resolution_branch(x, params)
    jax.block_until_ready((feature_map, feature_map_high))

    assert feature_map.shape == (2, 64, 16, 16)
    assert feature_map_high.shape == (2, 64, 16, 16)
    assert bool(jnp.all(feature_map >= 0.0))
    assert bool(jnp.all(feature_map_high >= 0.0))
    print("KERNEL_OK")
</pallas_src>

<mosaic_0001>
module attributes {stable_mosaic.version = 11 : i64} {
  func.func @_gemm_affine_relu_kernel(%arg0: i32, %arg1: memref<64x64xbf16, #tpu.memory_space<vmem>>, %arg2: memref<64x128xbf16, #tpu.memory_space<vmem>>, %arg3: memref<1x128xf32, #tpu.memory_space<vmem>>, %arg4: memref<1x128xf32, #tpu.memory_space<vmem>>, %arg5: memref<64x128xbf16, #tpu.memory_space<vmem>>) attributes {dimension_semantics = [#tpu.dimension_semantics<parallel>], iteration_bounds = array<i64: 4>, scalar_prefetch = 0 : i64, scratch_operands = 0 : i64, tpu.core_type = #tpu.core_type<tc>, window_params = [{transform_indices = @transform_0, window_bounds = array<i64: 64, 64>}, {pipeline_mode = #tpu.pipeline_mode<synchronous>, transform_indices = @transform_1, window_bounds = array<i64: 64, 128>}, {pipeline_mode = #tpu.pipeline_mode<synchronous>, transform_indices = @transform_2, window_bounds = array<i64: 1, 128>}, {pipeline_mode = #tpu.pipeline_mode<synchronous>, transform_indices = @transform_3, window_bounds = array<i64: 1, 128>}, {transform_indices = @transform_4, window_bounds = array<i64: 64, 128>}]} {
    %c0 = arith.constant 0 : index
    %c0_0 = arith.constant 0 : index
    %0 = vector.load %arg1[%c0, %c0_0] : memref<64x64xbf16, #tpu.memory_space<vmem>>, vector<64x64xbf16>
    %c0_1 = arith.constant 0 : index
    %c0_2 = arith.constant 0 : index
    %1 = vector.load %arg2[%c0_1, %c0_2] : memref<64x128xbf16, #tpu.memory_space<vmem>>, vector<64x128xbf16>
    %cst = arith.constant dense<0.000000e+00> : vector<64x128xf32>
    %2 = tpu.matmul %0, %1, %cst {dimension_numbers = #tpu.dot_dimension_numbers<[1], [0], [0], [1], [0, 0, 1, 1], [], []>} : vector<64x64xbf16>, vector<64x128xbf16>, vector<64x128xf32> -> vector<64x128xf32>
    %c0_3 = arith.constant 0 : index
    %c0_4 = arith.constant 0 : index
    %3 = vector.load %arg3[%c0_3, %c0_4] : memref<1x128xf32, #tpu.memory_space<vmem>>, vector<1x128xf32>
    %4 = vector.broadcast %3 : vector<1x128xf32> to vector<64x128xf32>
    %5 = arith.mulf %2, %4 : vector<64x128xf32>
    %c0_5 = arith.constant 0 : index
    %c0_6 = arith.constant 0 : index
    %6 = vector.load %arg4[%c0_5, %c0_6] : memref<1x128xf32, #tpu.memory_space<vmem>>, vector<1x128xf32>
    %7 = vector.broadcast %6 : vector<1x128xf32> to vector<64x128xf32>
    %8 = arith.addf %5, %7 : vector<64x128xf32>
    %cst_7 = arith.constant 0.000000e+00 : f32
    %9 = vector.broadcast %cst_7 : f32 to vector<64x128xf32>
    %10 = arith.maximumf %8, %9 : vector<64x128xf32>
    %11 = arith.truncf %10 : vector<64x128xf32> to vector<64x128xbf16>
    %c0_8 = arith.constant 0 : index
    %c0_9 = arith.constant 0 : index
    %12 = vector.load %arg5[%c0_8, %c0_9] : memref<64x128xbf16, #tpu.memory_space<vmem>>, vector<64x128xbf16>
    tpu.vector_store %arg5[%c0_8, %c0_9], %11 {strides = array<i32>} : memref<64x128xbf16, #tpu.memory_space<vmem>>, vector<64x128xbf16>,
    return
  }
  func.func @transform_0(%arg0: i32) -> (i32, i32) {
    %c0_i32 = arith.constant 0 : i32
    %c0_i32_0 = arith.constant 0 : i32
    return %arg0, %c0_i32 : i32, i32
  }
  func.func @transform_1(%arg0: i32) -> (i32, i32) {
    %c0_i32 = arith.constant 0 : i32
    %c0_i32_0 = arith.constant 0 : i32
    %c0_i32_1 = arith.constant 0 : i32
    return %c0_i32, %c0_i32_0 : i32, i32
  }
  func.func @transform_2(%arg0: i32) -> (i32, i32) {
    %c0_i32 = arith.constant 0 : i32
    %c0_i32_0 = arith.constant 0 : i32
    %c0_i32_1 = arith.constant 0 : i32
    return %c0_i32, %c0_i32_0 : i32, i32
  }
  func.func @transform_3(%arg0: i32) -> (i32, i32) {
    %c0_i32 = arith.constant 0 : i32
    %c0_i32_0 = arith.constant 0 : i32
    %c0_i32_1 = arith.constant 0 : i32
    return %c0_i32, %c0_i32_0 : i32, i32
  }
  func.func @transform_4(%arg0: i32) -> (i32, i32) {
    %c0_i32 = arith.constant 0 : i32
    %c0_i32_0 = arith.constant 0 : i32
    return %arg0, %c0_i32 : i32, i32
  }
}

module attributes {stable_mosaic.version = 11 : i64} {
  func.func @_half_and_up_kernel(%arg0: i32, %arg1: memref<9x2x9x128xbf16, #tpu.memory_space<vmem>>, %arg2: memref<3x256x64xbf16, #tpu.memory_space<vmem>>, %arg3: memref<1x64xf32, #tpu.memory_space<vmem>>, %arg4: memref<1x64xf32, #tpu.memory_space<vmem>>, %arg5: memref<64x256xbf16, #tpu.memory_space<vmem>>, %arg6: memref<1x256xf32, #tpu.memory_space<vmem>>, %arg7: memref<1x256xf32, #tpu.memory_space<vmem>>, %arg8: memref<8x2x8x128xbf16, #tpu.memory_space<vmem>>) attributes {dimension_semantics = [#tpu.dimension_semantics<parallel>], iteration_bounds = array<i64: 2>, scalar_prefetch = 0 : i64, scratch_operands = 0 : i64, tpu.core_type = #tpu.core_type<tc>, window_params = [{transform_indices = @transform_0, window_bounds = array<i64: 9, 2, 9, 128>}, {pipeline_mode = #tpu.pipeline_mode<synchronous>, transform_indices = @transform_1, window_bounds = array<i64: 3, 256, 64>}, {pipeline_mode = #tpu.pipeline_mode<synchronous>, transform_indices = @transform_2, window_bounds = array<i64: 1, 64>}, {pipeline_mode = #tpu.pipeline_mode<synchronous>, transform_indices = @transform_3, window_bounds = array<i64: 1, 64>}, {pipeline_mode = #tpu.pipeline_mode<synchronous>, transform_indices = @transform_4, window_bounds = array<i64: 64, 256>}, {pipeline_mode = #tpu.pipeline_mode<synchronous>, transform_indices = @transform_5, window_bounds = array<i64: 1, 256>}, {pipeline_mode = #tpu.pipeline_mode<synchronous>, transform_indices = @transform_6, window_bounds = array<i64: 1, 256>}, {transform_indices = @transform_7, window_bounds = array<i64: 8, 2, 8, 128>}]} {
    %cst = arith.constant 0.000000e+00 : f32
    %0 = vector.broadcast %cst : f32 to vector<64x64xf32>
    %c0 = arith.constant 0 : index
    %c0_0 = arith.constant 0 : index
    %c0_1 = arith.constant 0 : index
    %c0_2 = arith.constant 0 : index
    %1 = vector.load %arg1[%c0, %c0_0, %c0_1, %c0_2] : memref<9x2x9x128xbf16, #tpu.memory_space<vmem>>, vector<8x1x8x128xbf16>
    %2 = vector.shape_cast %1 : vector<8x1x8x128xbf16> to vector<8x8x128xbf16>
    %c0_3 = arith.constant 0 : index
    %c0_4 = arith.constant 0 : index
    %c1 = arith.constant 1 : index
    %c0_5 = arith.constant 0 : index
    %3 = vector.load %arg1[%c0_3, %c0_4, %c1, %c0_5] : memref<9x2x9x128xbf16, #tpu.memory_space<vmem>>, vector<8x1x8x128xbf16>
    %4 = vector.shape_cast %3 : vector<8x1x8x128xbf16> to vector<8x8x128xbf16>
    %5 = tpu.concatenate %2, %4 in 2 : vector<8x8x128xbf16>, vector<8x8x128xbf16> -> vector<8x8x256xbf16>
    %6 = vector.shape_cast %5 : vector<8x8x256xbf16> to vector<64x256xbf16>
    %c0_6 = arith.constant 0 : index
    %c0_7 = arith.constant 0 : index
    %c0_8 = arith.constant 0 : index
    %7 = vector.load %arg2[%c0_6, %c0_7, %c0_8] : memref<3x256x64xbf16, #tpu.memory_space<vmem>>, vector<1x256x64xbf16>
    %8 = vector.shape_cast %7 : vector<1x256x64xbf16> to vector<256x64xbf16>
    %cst_9 = arith.constant dense<0.000000e+00> : vector<64x64xf32>
    %9 = tpu.matmul %6, %8, %cst_9 {dimension_numbers = #tpu.dot_dimension_numbers<[1], [0], [0], [1], [0, 0, 1, 1], [], []>} : vector<64x256xbf16>, vector<256x64xbf16>, vector<64x64xf32> -> vector<64x64xf32>
    %10 = arith.addf %0, %9 : vector<64x64xf32>
    %c0_10 = arith.constant 0 : index
    %c1_11 = arith.constant 1 : index
    %c0_12 = arith.constant 0 : index
    %c0_13 = arith.constant 0 : index
    %11 = vector.load %arg1[%c0_10, %c1_11, %c0_12, %c0_13] : memref<9x2x9x128xbf16, #tpu.memory_space<vmem>>, vector<8x1x8x128xbf16>
    %12 = vector.shape_cast %11 : vector<8x1x8x128xbf16> to vector<8x8x128xbf16>
    %c0_14 = arith.constant 0 : index
    %c1_15 = arith.constant 1 : index
    %c1_16 = arith.constant 1 : index
    %c0_17 = arith.constant 0 : index
    %13 = vector.load %arg1[%c0_14, %c1_15, %c1_16, %c0_17] : memref<9x2x9x128xbf16, #tpu.memory_space<vmem>>, vector<8x1x8x128xbf16>
    %14 = vector.shape_cast %13 : vector<8x1x8x128xbf16> to vector<8x8x128xbf16>
    %15 = tpu.concatenate %12, %14 in 2 : vector<8x8x128xbf16>, vector<8x8x128xbf16> -> vector<8x8x256xbf16>
    %16 = vector.shape_cast %15 : vector<8x8x256xbf16> to vector<64x256xbf16>
    %c1_18 = arith.constant 1 : index
    %c0_19 = arith.constant 0 : index
    %c0_20 = arith.constant 0 : index
    %17 = vector.load %arg2[%c1_18, %c0_19, %c0_20] : memref<3x256x64xbf16, #tpu.memory_space<vmem>>, vector<1x256x64xbf16>
    %18 = vector.shape_cast %17 : vector<1x256x64xbf16> to vector<256x64xbf16>
    %cst_21 = arith.constant dense<0.000000e+00> : vector<64x64xf32>
    %19 = tpu.matmul %16, %18, %cst_21 {dimension_numbers = #tpu.dot_dimension_numbers<[1], [0], [0], [1], [0, 0, 1, 1], [], []>} : vector<64x256xbf16>, vector<256x64xbf16>, vector<64x64xf32> -> vector<64x64xf32>
    %20 = arith.addf %10, %19 : vector<64x64xf32>
    %c1_22 = arith.constant 1 : index
    %c0_23 = arith.constant 0 : index
    %c0_24 = arith.constant 0 : index
    %c0_25 = arith.constant 0 : index
    %21 = vector.load %arg1[%c1_22, %c0_23, %c0_24, %c0_25] : memref<9x2x9x128xbf16, #tpu.memory_space<vmem>>, vector<8x1x8x128xbf16>
    %22 = vector.shape_cast %21 : vector<8x1x8x128xbf16> to vector<8x8x128xbf16>
    %c1_26 = arith.constant 1 : index
    %c0_27 = arith.constant 0 : index
    %c1_28 = arith.constant 1 : index
    %c0_29 = arith.constant 0 : index
    %23 = vector.load %arg1[%c1_26, %c0_27, %c1_28, %c0_29] : memref<9x2x9x128xbf16, #tpu.memory_space<vmem>>, vector<8x1x8x128xbf16>
    %24 = vector.shape_cast %23 : vector<8x1x8x128xbf16> to vector<8x8x128xbf16>
    %25 = tpu.concatenate %22, %24 in 2 : vector<8x8x128xbf16>, vector<8x8x128xbf16> -> vector<8x8x256xbf16>
    %26 = vector.shape_cast %25 : vector<8x8x256xbf16> to vector<64x256xbf16>
    %c2 = arith.constant 2 : index
    %c0_30 = arith.constant 0 : index
    %c0_31 = arith.constant 0 : index
    %27 = vector.load %arg2[%c2, %c0_30, %c0_31] : memref<3x256x64xbf16, #tpu.memory_space<vmem>>, vector<1x256x64xbf16>
    %28 = vector.shape_cast %27 : vector<1x256x64xbf16> to vector<256x64xbf16>
    %cst_32 = arith.constant dense<0.000000e+00> : vector<64x64xf32>
    %29 = tpu.matmul %26, %28, %cst_32 {dimension_numbers = #tpu.dot_dimension_numbers<[1], [0], [0], [1], [0, 0, 1, 1], [], []>} : vector<64x256xbf16>, vector<256x64xbf16>, vector<64x64xf32> -> vector<64x64xf32>
    %30 = arith.addf %20, %29 : vector<64x64xf32>
    %c0_33 = arith.constant 0 : index
    %c0_34 = arith.constant 0 : index
    %31 = vector.load %arg3[%c0_33, %c0_34] : memref<1x64xf32, #tpu.memory_space<vmem>>, vector<1x64xf32>
    %32 = vector.broadcast %31 : vector<1x64xf32> to vector<64x64xf32>
    %33 = arith.mulf %30, %32 : vector<64x64xf32>
    %c0_35 = arith.constant 0 : index
    %c0_36 = arith.constant 0 : index
    %34 = vector.load %arg4[%c0_35, %c0_36] : memref<1x64xf32, #tpu.memory_space<vmem>>, vector<1x64xf32>
    %35 = vector.broadcast %34 : vector<1x64xf32> to vector<64x64xf32>
    %36 = arith.addf %33, %35 : vector<64x64xf32>
    %cst_37 = arith.constant 0.000000e+00 : f32
    %37 = vector.broadcast %cst_37 : f32 to vector<64x64xf32>
    %38 = arith.maximumf %36, %37 : vector<64x64xf32>
    %39 = arith.truncf %38 : vector<64x64xf32> to vector<64x64xbf16>
    %c0_38 = arith.constant 0 : index
    %c0_39 = arith.constant 0 : index
    %40 = vector.load %arg5[%c0_38, %c0_39] : memref<64x256xbf16, #tpu.memory_space<vmem>>, vector<64x256xbf16>
    %cst_40 = arith.constant dense<0.000000e+00> : vector<64x256xf32>
    %41 = tpu.matmul %39, %40, %cst_40 {dimension_numbers = #tpu.dot_dimension_numbers<[1], [0], [0], [1], [0, 0, 1, 1], [], []>} : vector<64x64xbf16>, vector<64x256xbf16>, vector<64x256xf32> -> vector<64x256xf32>
    %c0_41 = arith.constant 0 : index
    %c0_42 = arith.constant 0 : index
    %42 = vector.load %arg6[%c0_41, %c0_42] : memref<1x256xf32, #tpu.memory_space<vmem>>, vector<1x256xf32>
    %43 = vector.broadcast %42 : vector<1x256xf32> to vector<64x256xf32>
    %44 = arith.mulf %41, %43 : vector<64x256xf32>
    %c0_43 = arith.constant 0 : index
    %c0_44 = arith.constant 0 : index
    %45 = vector.load %arg7[%c0_43, %c0_44] : memref<1x256xf32, #tpu.memory_space<vmem>>, vector<1x256xf32>
    %46 = vector.broadcast %45 : vector<1x256xf32> to vector<64x256xf32>
    %47 = arith.addf %44, %46 : vector<64x256xf32>
    %cst_45 = arith.constant 0.000000e+00 : f32
    %48 = vector.broadcast %cst_45 : f32 to vector<64x256xf32>
    %49 = arith.maximumf %47, %48 : vector<64x256xf32>
    %50 = vector.extract_strided_slice %49 {offsets = [0, 0], sizes = [64, 128], strides = [1, 1]} : vector<64x256xf32> to vector<64x128xf32>
    %51 = vector.shape_cast %50 : vector<64x128xf32> to vector<8x8x128xf32>
    %52 = arith.truncf %51 : vector<8x8x128xf32> to vector<8x8x128xbf16>
    %c0_46 = arith.constant 0 : index
    %c0_47 = arith.constant 0 : index
    %c0_48 = arith.constant 0 : index
    %c0_49 = arith.constant 0 : index
    %53 = vector.load %arg8[%c0_46, %c0_47, %c0_48, %c0_49] : memref<8x2x8x128xbf16, #tpu.memory_space<vmem>>, vector<8x1x8x128xbf16>
    %54 = vector.shape_cast %53 : vector<8x1x8x128xbf16> to vector<8x8x128xbf16>
    %55 = vector.shape_cast %52 : vector<8x8x128xbf16> to vector<8x1x8x128xbf16>
    tpu.vector_store %arg8[%c0_46, %c0_47, %c0_48, %c0_49], %55 {strides = array<i32>} : memref<8x2x8x128xbf16, #tpu.memory_space<vmem>>, vector<8x1x8x128xbf16>,
    %56 = vector.extract_strided_slice %49 {offsets = [0, 128], sizes = [64, 128], strides = [1, 1]} : vector<64x256xf32> to vector<64x128xf32>
    %57 = vector.shape_cast %56 : vector<64x128xf32> to vector<8x8x128xf32>
    %58 = arith.truncf %57 : vector<8x8x128xf32> to vector<8x8x128xbf16>
    %c0_50 = arith.constant 0 : index
    %c1_51 = arith.constant 1 : index
    %c0_52 = arith.constant 0 : index
    %c0_53 = arith.constant 0 : index
    %59 = vector.load %arg8[%c0_50, %c1_51, %c0_52, %c0_53] : memref<8x2x8x128xbf16, #tpu.memory_space<vmem>>, vector<8x1x8x128xbf16>
    %60 = vector.shape_cast %59 : vector<8x1x8x128xbf16> to vector<8x8x128xbf16>
    %61 = vector.shape_cast %58 : vector<8x8x128xbf16> to vector<8x1x8x128xbf16>
    tpu.vector_store %arg8[%c0_50, %c1_51, %c0_52, %c0_53], %61 {strides = array<i32>} : memref<8x2x8x128xbf16, #tpu.memory_space<vmem>>, vector<8x1x8x128xbf16>,
    return
  }
  func.func @transform_0(%arg0: i32) -> (i32, i32, i32, i32) {
    %c0_i32 = arith.constant 0 : i32
    %c0_i32_0 = arith.constant 0 : i32
    %c0_i32_1 = arith.constant 0 : i32
    %c0_i32_2 = arith.constant 0 : i32
    return %arg0, %c0_i32, %c0_i32_0, %c0_i32_1 : i32, i32, i32, i32
  }
  func.func @transform_1(%arg0: i32) -> (i32, i32, i32) {
    %c0_i32 = arith.constant 0 : i32
    %c0_i32_0 = arith.constant 0 : i32
    %c0_i32_1 = arith.constant 0 : i32
    %c0_i32_2 = arith.constant 0 : i32
    return %c0_i32, %c0_i32_0, %c0_i32_1 : i32, i32, i32
  }
  func.func @transform_2(%arg0: i32) -> (i32, i32) {
    %c0_i32 = arith.constant 0 : i32
    %c0_i32_0 = arith.constant 0 : i32
    %c0_i32_1 = arith.constant 0 : i32
    return %c0_i32, %c0_i32_0 : i32, i32
  }
  func.func @transform_3(%arg0: i32) -> (i32, i32) {
    %c0_i32 = arith.constant 0 : i32
    %c0_i32_0 = arith.constant 0 : i32
    %c0_i32_1 = arith.constant 0 : i32
    return %c0_i32, %c0_i32_0 : i32, i32
  }
  func.func @transform_4(%arg0: i32) -> (i32, i32) {
    %c0_i32 = arith.constant 0 : i32
    %c0_i32_0 = arith.constant 0 : i32
    %c0_i32_1 = arith.constant 0 : i32
    return %c0_i32, %c0_i32_0 : i32, i32
  }
  func.func @transform_5(%arg0: i32) -> (i32, i32) {
    %c0_i32 = arith.constant 0 : i32
    %c0_i32_0 = arith.constant 0 : i32
    %c0_i32_1 = arith.constant 0 : i32
    return %c0_i32, %c0_i32_0 : i32, i32
  }
  func.func @transform_6(%arg0: i32) -> (i32, i32) {
    %c0_i32 = arith.constant 0 : i32
    %c0_i32_0 = arith.constant 0 : i32
    %c0_i32_1 = arith.constant 0 : i32
    return %c0_i32, %c0_i32_0 : i32, i32
  }
  func.func @transform_7(%arg0: i32) -> (i32, i32, i32, i32) {
    %c0_i32 = arith.constant 0 : i32
    %c0_i32_0 = arith.constant 0 : i32
    %c0_i32_1 = arith.constant 0 : i32
    %c0_i32_2 = arith.constant 0 : i32
    return %arg0, %c0_i32, %c0_i32_0, %c0_i32_1 : i32, i32, i32, i32
  }
}

</mosaic_0001>

<llo_original>
// kernel: low_resolution_branch.2
$region0: #{low_resolution_branch.2}
  #allocation0 [shape = 'u32[]', space=smem, size = 0x4, offset = 0x4, fixed_abs, tag = 'smem constant byte address 0x4 - core index']
  #allocation1 [shape = 'u32[144,128]{1,0:T(1,128)}', space=vmem, size = 0x12000, scoped, tag = 'internal scratch']
  %s0 = inlined_call_operand.hbm [shape: bf16[256,64], index: 0, kind: input, shape index: {}]
  %s1 = inlined_call_operand.hbm [shape: bf16[64,128], index: 1, kind: input, shape index: {}]
  %s2 = inlined_call_operand.hbm [shape: f32[1,128], index: 2, kind: input, shape index: {}]
  %s3 = inlined_call_operand.hbm [shape: f32[1,128], index: 3, kind: input, shape index: {}]
  %s4 = inlined_call_operand.hbm [shape: bf16[256,128], index: 4, kind: output, shape index: {}]
  %s5 = sld [smem:[#allocation0]]
  $region65: #{low_resolution_branch.2} parent=0
    _
  %s7 = ssub.s32 1, %s5
  %s8 = scalar_select 0, %s7, %s5
  $region1: #{low_resolution_branch.2} parent=0
    #allocation2 [shape = 'u8[32768]{0}', space=vmem, size = 0x8000, scoped, tag = 'input window, operand 0']
    #allocation3 [shape = 's32[2]{0}', space=sflag, size = 0x8, scoped, tag = 'scoped memory for low_resolution_branch.2']
    #allocation4 [shape = 's32[2]{0}', space=sflag, size = 0x8, scoped, tag = 'scoped memory for low_resolution_branch.2']
    #allocation5 [shape = 'u8[16384]{0}', space=vmem, size = 0x4000, scoped, tag = 'input window, operand 1, single buffered']
    #allocation6 [shape = 's32[1]{0}', space=sflag, size = 0x4, scoped, tag = 'scoped memory for low_resolution_branch.2']
    #allocation7 [shape = 'u8[512]{0}', space=vmem, size = 0x400, scoped, tag = 'input window, operand 2, single buffered']
    #allocation8 [shape = 'u8[512]{0}', space=vmem, size = 0x400, scoped, tag = 'input window, operand 3, single buffered']
    #allocation9 [shape = 's32[1]{0}', space=sflag, size = 0x4, scoped, tag = 'scoped memory for low_resolution_branch.2']
    #allocation10 [shape = 'u8[32768]{0}', space=vmem, size = 0x8000, scoped, tag = 'output window, operand 0']
    %9 = vsyncpa [#allocation3], 0
    %s10 = scalar_lea.sflag [#allocation3], 1
    %11 = vsyncpa %s10, 0
    %12 = vsyncpa [#allocation6], 0
    %13 = vsyncpa [#allocation9], 0
    %14 = vsyncpa [#allocation4], 0
    %s15 = scalar_lea.sflag [#allocation4], 1
    %16 = vsyncpa %s15, 0
    loop: start=0, step=1, limit=6
    $region2: #{low_resolution_branch.2} parent=1 // loop_pre_header
      _
    $region3: #{low_resolution_branch.2} parent=1 // loop_header
      %s18 = sphi 0, %s22
      %p19 = scmp.ge.s32.totalorder %s18, 6
      %s28 = sphi 0, %s30
      %s31 = sphi 0, %s28
      %s32 = sphi 0, %s31
      %s48 = sphi 0, %s32
      %s52 = sphi 0, %s52
      %s54 = sphi 0, %s52
      %s55 = sphi 0, %s54
      %s69 = sphi 0, %s55
      %s73 = sphi 0, %s73
      %s75 = sphi 0, %s73
      %s76 = sphi 0, %s75
      %s90 = sphi 0, %s76
      %s94 = sphi 0, %s94
      %s96 = sphi 0, %s94
      %s97 = sphi 0, %s96
      %s111 = sphi 0, %s97
      %s117 = sphi 0, %s119
      %s120 = sphi 0, %s117
      %s121 = sphi 0, %s120
      %s137 = sphi 0, %s121
    $region4: #{low_resolution_branch.2} parent=1 // loop_header_branch
      %21 = sbr.rel (%p19) target = $region8
    $region5: #{low_resolution_branch.2} parent=1 // loop_body
      %s23 = ssub.s32 %s18, 1
      %s24 = ssub.s32 %s18, 2
      %s25 = sadd.s32 %s18, 1
      %s26 = ssub.s32 %s18, %s25
      %p27 = scmp.eq.s32.totalorder %s26, 0
      %s29 = sadd.s32 %s28, 1
      %s30 = scalar_select %p27, %s28, %s29
      %p33 = pneg %p27
      %p34 = scmp.eq.s32.totalorder %s18, 3
      %p35 = por %p33, %p34
      %p36 = scmp.ne.s32.totalorder %s28, %s31
      %p37 = scmp.eq.s32.totalorder %s18, 0
      %p38 = por %p36, %p37
      %p39 = scmp.ne.s32.totalorder %s28, %s31
      %p40 = scmp.eq.s32.totalorder %s23, 3
      %p41 = por %p39, %p40
      %p42 = scmp.ne.s32.totalorder %s31, %s32
      %p43 = scmp.eq.s32.totalorder %s23, 0
      %p44 = por %p42, %p43
      %p45 = scmp.ne.s32.totalorder %s31, %s32
      %p46 = scmp.eq.s32.totalorder %s24, 3
      %p47 = por %p45, %p46
      %p49 = scmp.ne.s32.totalorder %s32, %s48
      %p50 = scmp.eq.s32.totalorder %s24, 0
      %p51 = por %p49, %p50
      %s53 = sadd.s32 %s52, 1
      %p56 = scmp.eq.s32.totalorder %s18, 3
      %p57 = scmp.ne.s32.totalorder %s52, %s54
      %p58 = scmp.eq.s32.totalorder %s18, 0
      %p59 = por %p57, %p58
      %p60 = scmp.ne.s32.totalorder %s52, %s54
      %p61 = scmp.eq.s32.totalorder %s23, 3
      %p62 = por %p60, %p61
      %p63 = scmp.ne.s32.totalorder %s54, %s55
      %p64 = scmp.eq.s32.totalorder %s23, 0
      %p65 = por %p63, %p64
      %p66 = scmp.ne.s32.totalorder %s54, %s55
      %p67 = scmp.eq.s32.totalorder %s24, 3
      %p68 = por %p66, %p67
      %p70 = scmp.ne.s32.totalorder %s55, %s69
      %p71 = scmp.eq.s32.totalorder %s24, 0
      %p72 = por %p70, %p71
      %s74 = sadd.s32 %s73, 1
      %p77 = scmp.eq.s32.totalorder %s18, 3
      %p78 = scmp.ne.s32.totalorder %s73, %s75
      %p79 = scmp.eq.s32.totalorder %s18, 0
      %p80 = por %p78, %p79
      %p81 = scmp.ne.s32.totalorder %s73, %s75
      %p82 = scmp.eq.s32.totalorder %s23, 3
      %p83 = por %p81, %p82
      %p84 = scmp.ne.s32.totalorder %s75, %s76
      %p85 = scmp.eq.s32.totalorder %s23, 0
      %p86 = por %p84, %p85
      %p87 = scmp.ne.s32.totalorder %s75, %s76
      %p88 = scmp.eq.s32.totalorder %s24, 3
      %p89 = por %p87, %p88
      %p91 = scmp.ne.s32.totalorder %s76, %s90
      %p92 = scmp.eq.s32.totalorder %s24, 0
      %p93 = por %p91, %p92
      %s95 = sadd.s32 %s94, 1
      %p98 = scmp.eq.s32.totalorder %s18, 3
      %p99 = scmp.ne.s32.totalorder %s94, %s96
      %p100 = scmp.eq.s32.totalorder %s18, 0
      %p101 = por %p99, %p100
      %p102 = scmp.ne.s32.totalorder %s94, %s96
      %p103 = scmp.eq.s32.totalorder %s23, 3
      %p104 = por %p102, %p103
      %p105 = scmp.ne.s32.totalorder %s96, %s97
      %p106 = scmp.eq.s32.totalorder %s23, 0
      %p107 = por %p105, %p106
      %p108 = scmp.ne.s32.totalorder %s96, %s97
      %p109 = scmp.eq.s32.totalorder %s24, 3
      %p110 = por %p108, %p109
      %p112 = scmp.ne.s32.totalorder %s97, %s111
      %p113 = scmp.eq.s32.totalorder %s24, 0
      %p114 = por %p112, %p113
      %s115 = ssub.s32 %s18, %s25
      %p116 = scmp.eq.s32.totalorder %s115, 0
      %s118 = sadd.s32 %s117, 1
      %s119 = scalar_select %p116, %s117, %s118
      %p122 = pneg %p116
      %p123 = scmp.eq.s32.totalorder %s18, 3
      %p124 = por %p122, %p123
      %p125 = scmp.ne.s32.totalorder %s117, %s120
      %p126 = scmp.eq.s32.totalorder %s18, 0
      %p127 = por %p125, %p126
      %p128 = scmp.ne.s32.totalorder %s117, %s120
      %p129 = scmp.eq.s32.totalorder %s23, 3
      %p130 = por %p128, %p129
      %p131 = scmp.ne.s32.totalorder %s120, %s121
      %p132 = scmp.eq.s32.totalorder %s23, 0
      %p133 = por %p131, %p132
      %p134 = scmp.ne.s32.totalorder %s120, %s121
      %p135 = scmp.eq.s32.totalorder %s24, 3
      %p136 = por %p134, %p135
      %p138 = scmp.ne.s32.totalorder %s121, %s137
      %p139 = scmp.eq.s32.totalorder %s24, 0
      %p140 = por %p138, %p139
      %p141 = scmp.le.s32.totalorder 1, %s18
      %p142 = scmp.lt.s32.totalorder %s18, 5
      %p143 = pnand %p141, %p142
      %p144 = pneg %p143
      // Predicated region
      $region9: #{low_resolution_branch.2} parent=5 // pred_check
        _
      $region10: #{low_resolution_branch.2} parent=5 // pred_check_branch
        %146 = sbr.rel (%p143) target = $region12
      $region11: #{low_resolution_branch.2} parent=5 // pred_region
        %s147 = ssub.s32 %s18, 1
        // Predicated region
        $region13: #{low_resolution_branch.2} parent=11 // pred_check
          %p148 = pneg %p65
        $region14: #{low_resolution_branch.2} parent=11 // pred_check_branch
          %150 = sbr.rel (%p148) target = $region16
        $region15: #{low_resolution_branch.2} parent=11 // pred_region
          %s152 = ssub.s32 512, 512
          %153 = vsyncadd [#allocation6], %s152
          %s154 = sshll.u32 [#allocation5], 4
          %s155 = int_to_ptr.vmem [resolvable:$true] %s154
          %160 = dma.hbm_to_vmem [thread:$0]  %s1, 512, %s155, [#allocation6], 64, 64, 4
        $region16: #{low_resolution_branch.2} parent=11 // pred_fallthru
          _
        // Predicated region
        $region17: #{low_resolution_branch.2} parent=11 // pred_check
          %p161 = pneg %p86
        $region18: #{low_resolution_branch.2} parent=11 // pred_check_branch
          %163 = sbr.rel (%p161) target = $region20
        $region19: #{low_resolution_branch.2} parent=11 // pred_region
          %s165 = ssub.s32 16, 16
          %166 = vsyncadd [#allocation6], %s165
          %s168 = sshll.u32 [#allocation7], 4
          %s169 = int_to_ptr.vmem [resolvable:$true] %s168
          %171 = dma.hbm_to_vmem [thread:$0]  %s2, 16, %s169, [#allocation6]
        $region20: #{low_resolution_branch.2} parent=11 // pred_fallthru
          _
        // Predicated region
        $region21: #{low_resolution_branch.2} parent=11 // pred_check
          %p172 = pneg %p107
        $region22: #{low_resolution_branch.2} parent=11 // pred_check_branch
          %174 = sbr.rel (%p172) target = $region24
        $region23: #{low_resolution_branch.2} parent=11 // pred_region
          %s176 = ssub.s32 16, 16
          %177 = vsyncadd [#allocation9], %s176
          %s179 = sshll.u32 [#allocation8], 4
          %s180 = int_to_ptr.vmem [resolvable:$true] %s179
          %182 = dma.hbm_to_vmem [thread:$0]  %s3, 16, %s180, [#allocation9]
        $region24: #{low_resolution_branch.2} parent=11 // pred_fallthru
          _
      $region12: #{low_resolution_branch.2} parent=5 // pred_fallthru
        _
      %p183 = scmp.lt.s32.totalorder %s18, 4
      // Predicated region
      $region25: #{low_resolution_branch.2} parent=5 // pred_check
        %p184 = pneg %p183
      $region26: #{low_resolution_branch.2} parent=5 // pred_check_branch
        %186 = sbr.rel (%p184) target = $region28
      $region27: #{low_resolution_branch.2} parent=5 // pred_region
        // Predicated region
        $region29: #{low_resolution_branch.2} parent=27 // pred_check
          %p187 = pneg %p38
        $region30: #{low_resolution_branch.2} parent=27 // pred_check_branch
          %189 = sbr.rel (%p187) target = $region32
        $region31: #{low_resolution_branch.2} parent=27 // pred_region
          %s190 = sand.u32 %s28, 1
          %s191 = scalar_lea.sflag [#allocation3], %s190
          %s192 = sand.u32 %s28, 1
          %s193 = smul.addr %s192, 32
          %s194 = scalar_lea.vmem [#allocation2], %s193
          %s195 = smul.u32 8, %s18
          %s197 = ssub.s32 512, 512
          %198 = vsyncadd %s191, %s197
          %s199 = smul.addr %s195, 64
          %s200 = scalar_lea.hbm %s0, %s199
          %s201 = sshll.u32 %s194, 4
          %s202 = int_to_ptr.vmem [resolvable:$true] %s201
          %207 = dma.hbm_to_vmem [thread:$0]  %s200, 512, %s202, %s191, 64, 64, 4
        $region32: #{low_resolution_branch.2} parent=27 // pred_fallthru
          _
      $region28: #{low_resolution_branch.2} parent=5 // pred_fallthru
        _
      %p208 = scmp.le.s32.totalorder 1, %s18
      %p209 = scmp.lt.s32.totalorder %s18, 5
      %p210 = pnand %p208, %p209
      %p211 = pneg %p210
      // Predicated region
      $region33: #{low_resolution_branch.2} parent=5 // pred_check
        _
      $region34: #{low_resolution_branch.2} parent=5 // pred_check_branch
        %213 = sbr.rel (%p210) target = $region36
      $region35: #{low_resolution_branch.2} parent=5 // pred_region
        %s214 = ssub.s32 %s18, 1
        %s215 = sand.u32 %s31, 1
        %s216 = scalar_lea.sflag [#allocation3], %s215
        %s217 = sand.u32 %s31, 1
        %s218 = smul.addr %s217, 32
        %s219 = scalar_lea.vmem [#allocation2], %s218
        // Predicated region
        $region37: #{low_resolution_branch.2} parent=35 // pred_check
          %p220 = pneg %p44
        $region38: #{low_resolution_branch.2} parent=35 // pred_check_branch
          %222 = sbr.rel (%p220) target = $region40
        $region39: #{low_resolution_branch.2} parent=35 // pred_region
          %223 = dma.done %s216, 512
        $region40: #{low_resolution_branch.2} parent=35 // pred_fallthru
          _
        // Predicated region
        $region41: #{low_resolution_branch.2} parent=35 // pred_check
          %p224 = pneg %p65
        $region42: #{low_resolution_branch.2} parent=35 // pred_check_branch
          %226 = sbr.rel (%p224) target = $region44
        $region43: #{low_resolution_branch.2} parent=35 // pred_region
          %227 = dma.done [#allocation6], 512
        $region44: #{low_resolution_branch.2} parent=35 // pred_fallthru
          _
        // Predicated region
        $region45: #{low_resolution_branch.2} parent=35 // pred_check
          %p228 = pneg %p86
        $region46: #{low_resolution_branch.2} parent=35 // pred_check_branch
          %230 = sbr.rel (%p228) target = $region48
        $region47: #{low_resolution_branch.2} parent=35 // pred_region
          %231 = dma.done [#allocation6], 16
        $region48: #{low_resolution_branch.2} parent=35 // pred_fallthru
          _
        // Predicated region
        $region49: #{low_resolution_branch.2} parent=35 // pred_check
          %p232 = pneg %p107
        $region50: #{low_resolution_branch.2} parent=35 // pred_check_branch
          %234 = sbr.rel (%p232) target = $region52
        $region51: #{low_resolution_branch.2} parent=35 // pred_region
          %235 = dma.done [#allocation9], 16
        $region52: #{low_resolution_branch.2} parent=35 // pred_fallthru
          _
        %s236 = sand.u32 %s31, 1
        %s237 = scalar_lea.sflag [#allocation3], %s236
        %s238 = sand.u32 %s31, 1
        %s239 = smul.addr %s238, 32
        %s240 = scalar_lea.vmem [#allocation2], %s239
        %p241 = pneg %p44
        %p242 = pneg %p41
        %p243 = pneg %p65
        %p244 = pneg %p62
        %p245 = pneg %p86
        %p246 = pneg %p83
        %p247 = pneg %p107
        %p248 = pneg %p104
        %p249 = pneg %p133
        %p250 = pneg %p130
        %s251 = sand.u32 %s120, 1
        %s252 = scalar_lea.sflag [#allocation4], %s251
        %s253 = sand.u32 %s120, 1
        %s254 = smul.addr %s253, 32
        %s255 = scalar_lea.vmem [#allocation10], %s254
        %s256 = smul.u32 8, %s23
        %s257 = smul.u32 8, %s23
        %v259 = vld [vmem:[%s219] sm:$0xf]
        %v260 = vld [vmem:[%s219 + $0x4] sm:$0xf]
        %v261 = vld [vmem:[%s219 + $0x8] sm:$0xf]
        %v262 = vld [vmem:[%s219 + $0xc] sm:$0xf]
        %v263 = vld [vmem:[%s219 + $0x10] sm:$0xf]
        %v264 = vld [vmem:[%s219 + $0x14] sm:$0xf]
        %v265 = vld [vmem:[%s219 + $0x18] sm:$0xf]
        %v266 = vld [vmem:[%s219 + $0x1c] sm:$0xf]
        %v267 = vld [vmem:[#allocation5] sm:$0xf]
        %v268 = vld [vmem:[#allocation5 + $0x4] sm:$0xf]
        %v269 = vld [vmem:[#allocation5 + $0x8] sm:$0xf]
        %v270 = vld [vmem:[#allocation5 + $0xc] sm:$0xf]
        %v271 = vld [vmem:[#allocation5 + $0x10] sm:$0xf]
        %v272 = vld [vmem:[#allocation5 + $0x14] sm:$0xf]
        %v273 = vld [vmem:[#allocation5 + $0x18] sm:$0xf]
        %v274 = vld [vmem:[#allocation5 + $0x1c] sm:$0xf]
        %v283 = vunpack.c.l.b16 %v259
        %v284 = vunpack.c.l.b16 %v260
        %v285 = vunpack.c.l.b16 %v261
        %v286 = vunpack.c.l.b16 %v262
        %v287 = vunpack.c.l.b16 %v263
        %v288 = vunpack.c.l.b16 %v264
        %v289 = vunpack.c.l.b16 %v265
        %v290 = vunpack.c.l.b16 %v266
        %v291 = vpack.c.b16 %v284, %v283
        %v292 = vpack.c.b16 %v286, %v285
        %v293 = vpack.c.b16 %v288, %v287
        %v294 = vpack.c.b16 %v290, %v289
        %v303 = vunpack.c.l.b16 %v267
        %v304 = vunpack.c.l.b16 %v268
        %v305 = vunpack.c.l.b16 %v269
        %v306 = vunpack.c.l.b16 %v270
        %v307 = vunpack.c.l.b16 %v271
        %v308 = vunpack.c.l.b16 %v272
        %v309 = vunpack.c.l.b16 %v273
        %v310 = vunpack.c.l.b16 %v274
        %v311 = vpack.c.b16 %v304, %v303
        %v312 = vpack.c.b16 %v306, %v305
        %v313 = vpack.c.b16 %v308, %v307
        %v314 = vpack.c.b16 %v310, %v309
        %vm319 = vcmask 523264
        %v321 = vsel %vm319, %v291, 0
        %v324 = vsel %vm319, %v292, 0
        %v327 = vsel %vm319, %v293, 0
        %v330 = vsel %vm319, %v294, 0
        %332 = vmatprep.subr.bf16.mxu0 0
        %333 = vmatpush1.bf16.msra.mxu0 %v311
        %334 = vmatprep.subr.bf16.mxu0 0
        %335 = vmatpush1.bf16.msra.mxu0 %v312
        %336 = vmatprep.subr.bf16.mxu0 0
        %337 = vmatpush1.bf16.msra.mxu0 %v313
        %338 = vmatprep.subr.bf16.mxu0 0
        %339 = vmatpush1.bf16.msra.mxu0 %v314
        %340 = vmatprep.subr.bf16.mxu0 0
        %341 = vmatpush1.bf16.msra.mxu0 0
        %342 = vmatprep.subr.bf16.mxu0 0
        %343 = vmatpush1.bf16.msra.mxu0 0
        %344 = vmatprep.subr.bf16.mxu0 0
        %345 = vmatpush1.bf16.msra.mxu0 0
        %346 = vmatprep.subr.bf16.mxu0 0
        %347 = vmatpush1.bf16.msra.mxu0 0
        %348 = vmatprep.subr.bf16.mxu0 0
        %349 = vmatpush1.bf16.msra.mxu0 0
        %350 = vmatprep.subr.bf16.mxu0 0
        %351 = vmatpush1.bf16.msra.mxu0 0
        %352 = vmatprep.subr.bf16.mxu0 0
        %353 = vmatpush1.bf16.msra.mxu0 0
        %354 = vmatprep.subr.bf16.mxu0 0
        %355 = vmatpush1.bf16.msra.mxu0 0
        %356 = vmatprep.subr.bf16.mxu0 0
        %357 = vmatpush1.bf16.msra.mxu0 0
        %358 = vmatprep.subr.bf16.mxu0 0
        %359 = vmatpush1.bf16.msra.mxu0 0
        %360 = vmatprep.subr.bf16.mxu0 0
        %361 = vmatpush1.bf16.msra.mxu0 0
        %362 = vmatprep.subr.bf16.mxu0 0
        %363 = vmatpush1.bf16.msra.mxu0 0
        %364 = vmatprep.mubr.bf16.mxu0 0
        %365 = vmatmul.mubr.bf16.gmra.mrb[0].mxu0 %v321
        %v366 = vpop.f32.mrb[0].mxu0
        %v367 = vadd.f32 0.0, %v366
        %v368 = vpop.f32.mrb[0].mxu0
        %v369 = vpop.f32.mrb[0].mxu0
        %v370 = vadd.f32 0.0, %v369
        %v371 = vpop.f32.mrb[0].mxu0
        %372 = vmatprep.mubr.bf16.mxu0 0
        %373 = vmatmul.mubr.bf16.gmra.mrb[0].mxu0 %v324
        %v374 = vpop.f32.mrb[0].mxu0
        %v375 = vadd.f32 0.0, %v374
        %v376 = vpop.f32.mrb[0].mxu0
        %v377 = vpop.f32.mrb[0].mxu0
        %v378 = vadd.f32 0.0, %v377
        %v379 = vpop.f32.mrb[0].mxu0
        %380 = vmatprep.mubr.bf16.mxu0 0
        %381 = vmatmul.mubr.bf16.gmra.mrb[0].mxu0 %v327
        %v382 = vpop.f32.mrb[0].mxu0
        %v383 = vadd.f32 0.0, %v382
        %v384 = vpop.f32.mrb[0].mxu0
        %v385 = vpop.f32.mrb[0].mxu0
        %v386 = vadd.f32 0.0, %v385
        %v387 = vpop.f32.mrb[0].mxu0
        %388 = vmatprep.mubr.bf16.mxu0 0
        %389 = vmatmul.mubr.bf16.gmra.mrb[0].mxu0 %v330
        %v390 = vpop.f32.mrb[0].mxu0
        %v391 = vadd.f32 0.0, %v390
        %v392 = vpop.f32.mrb[0].mxu0
        %v393 = vpop.f32.mrb[0].mxu0
        %v394 = vadd.f32 0.0, %v393
        %v395 = vpop.f32.mrb[0].mxu0
        %396 = vdwg.mxu0
        %v397 = vld [vmem:[#allocation7] sm:$0x1]
        %v399 = vlaneseq
        %v400 = vshrl.u32 %v399, 7
        %v401 = vsub.s32 0, %v400
        %v402 = vrot.slane %v397, %v401
        %v404 = vmul.f32 %v367, %v402
        %v405 = vmul.f32 %v370, %v402
        %v406 = vmul.f32 %v375, %v402
        %v407 = vmul.f32 %v378, %v402
        %v408 = vmul.f32 %v383, %v402
        %v409 = vmul.f32 %v386, %v402
        %v410 = vmul.f32 %v391, %v402
        %v411 = vmul.f32 %v394, %v402
        %v412 = vld [vmem:[#allocation8] sm:$0x1]
        %v414 = vlaneseq
        %v415 = vshrl.u32 %v414, 7
        %v416 = vsub.s32 0, %v415
        %v417 = vrot.slane %v412, %v416
        %v419 = vadd.f32 %v404, %v417
        %v420 = vadd.f32 %v405, %v417
        %v421 = vadd.f32 %v406, %v417
        %v422 = vadd.f32 %v407, %v417
        %v423 = vadd.f32 %v408, %v417
        %v424 = vadd.f32 %v409, %v417
        %v425 = vadd.f32 %v410, %v417
        %v426 = vadd.f32 %v411, %v417
        %v427 = vmax.f32 %v419, 0.0
        %v428 = vmax.f32 %v420, 0.0
        %v429 = vmax.f32 %v421, 0.0
        %v430 = vmax.f32 %v422, 0.0
        %v431 = vmax.f32 %v423, 0.0
        %v432 = vmax.f32 %v424, 0.0
        %v433 = vmax.f32 %v425, 0.0
        %v434 = vmax.f32 %v426, 0.0
        %v435 = vpack.c.bf16 %v428, %v427
        %v436 = vpack.c.bf16 %v430, %v429
        %v437 = vpack.c.bf16 %v432, %v431
        %v438 = vpack.c.bf16 %v434, %v433
        %v443 = vunpack.c.l.b16 %v435
        %v444 = vunpack.c.h.b16 %v435
        %v445 = vunpack.c.l.b16 %v436
        %v446 = vunpack.c.h.b16 %v436
        %v447 = vunpack.c.l.b16 %v437
        %v448 = vunpack.c.h.b16 %v437
        %v449 = vunpack.c.l.b16 %v438
        %v450 = vunpack.c.h.b16 %v438
        %v451 = vpack.c.b16 %v443, %v443
        %v452 = vpack.c.b16 %v444, %v444
        %v453 = vpack.c.b16 %v445, %v445
        %v454 = vpack.c.b16 %v446, %v446
        %v455 = vpack.c.b16 %v447, %v447
        %v456 = vpack.c.b16 %v448, %v448
        %v457 = vpack.c.b16 %v449, %v449
        %v458 = vpack.c.b16 %v450, %v450
        %467 = vst [vmem:[%s255] sm:$0xf] %v451
        %468 = vst [vmem:[%s255 + $0x4] sm:$0xf] %v452
        %469 = vst [vmem:[%s255 + $0x8] sm:$0xf] %v453
        %470 = vst [vmem:[%s255 + $0xc] sm:$0xf] %v454
        %471 = vst [vmem:[%s255 + $0x10] sm:$0xf] %v455
        %472 = vst [vmem:[%s255 + $0x14] sm:$0xf] %v456
        %473 = vst [vmem:[%s255 + $0x18] sm:$0xf] %v457
        %474 = vst [vmem:[%s255 + $0x1c] sm:$0xf] %v458
        %s475 = sand.u32 %s120, 1
        %s476 = scalar_lea.sflag [#allocation4], %s475
        %s477 = sand.u32 %s120, 1
        %s478 = smul.addr %s477, 32
        %s479 = scalar_lea.vmem [#allocation10], %s478
        // Predicated region
        $region53: #{low_resolution_branch.2} parent=35 // pred_check
          %p480 = pneg %p130
        $region54: #{low_resolution_branch.2} parent=35 // pred_check_branch
          %482 = sbr.rel (%p480) target = $region56
        $region55: #{low_resolution_branch.2} parent=35 // pred_region
          %s483 = smul.u32 8, %s23
          %s485 = ssub.s32 512, 512
          %486 = vsyncadd %s476, %s485
          %s487 = smul.addr %s483, 64
          %s488 = scalar_lea.hbm %s4, %s487
          %s489 = sshll.u32 %s479, 4
          %s490 = int_to_ptr.vmem [resolvable:$true] %s489
          %495 = dma.vmem_to_hbm [thread:$0]  %s490, 512, %s488, %s476, 64, 64, 4
        $region56: #{low_resolution_branch.2} parent=35 // pred_fallthru
          _
      $region36: #{low_resolution_branch.2} parent=5 // pred_fallthru
        _
      %p496 = scmp.le.s32.totalorder 2, %s18
      // Predicated region
      $region57: #{low_resolution_branch.2} parent=5 // pred_check
        %p497 = pneg %p496
      $region58: #{low_resolution_branch.2} parent=5 // pred_check_branch
        %499 = sbr.rel (%p497) target = $region60
      $region59: #{low_resolution_branch.2} parent=5 // pred_region
        %s500 = ssub.s32 %s18, 2
        // Predicated region
        $region61: #{low_resolution_branch.2} parent=59 // pred_check
          %p501 = pneg %p136
        $region62: #{low_resolution_branch.2} parent=59 // pred_check_branch
          %503 = sbr.rel (%p501) target = $region64
        $region63: #{low_resolution_branch.2} parent=59 // pred_region
          %s504 = sand.u32 %s121, 1
          %s505 = scalar_lea.sflag [#allocation4], %s504
          %s506 = sand.u32 %s121, 1
          %s507 = smul.addr %s506, 32
          %s508 = scalar_lea.vmem [#allocation10], %s507
          %509 = dma.done %s505, 512
        $region64: #{low_resolution_branch.2} parent=59 // pred_fallthru
          _
      $region60: #{low_resolution_branch.2} parent=5 // pred_fallthru
        _
    $region6: #{low_resolution_branch.2} parent=1 // loop_footer
      %s22 = sadd.s32 1, %s18
    $region7: #{low_resolution_branch.2} parent=1 // loop_footer_branch
      %17 = sbr.rel target = $region3
    $region8: #{low_resolution_branch.2} parent=1 // loop_exit
      _
    %510 = vsyncpa [#allocation3], 1
    %s511 = scalar_lea.sflag [#allocation3], 1
    %512 = vsyncpa %s511, 1
    %513 = vsyncpa [#allocation6], 1
    %514 = vsyncpa [#allocation9], 1
    %515 = vsyncpa [#allocation4], 1
    %s516 = scalar_lea.sflag [#allocation4], 1
    %517 = vsyncpa %s516, 1

// kernel: low_resolution_branch.3
$region0: #{low_resolution_branch.3}
  #allocation0 [shape = 'u32[]', space=smem, size = 0x4, offset = 0x4, fixed_abs, tag = 'smem constant byte address 0x4 - core index']
  #allocation1 [shape = 'u32[144,128]{1,0:T(1,128)}', space=vmem, size = 0x12000, scoped, tag = 'internal scratch']
  %s0 = inlined_call_operand.hbm [shape: bf16[18,2,9,128], index: 0, kind: input, shape index: {}]
  %s1 = inlined_call_operand.hbm [shape: bf16[3,256,64], index: 1, kind: input, shape index: {}]
  %s2 = inlined_call_operand.hbm [shape: f32[1,64], index: 2, kind: input, shape index: {}]
  %s3 = inlined_call_operand.hbm [shape: f32[1,64], index: 3, kind: input, shape index: {}]
  %s4 = inlined_call_operand.hbm [shape: bf16[64,256], index: 4, kind: input, shape index: {}]
  %s5 = inlined_call_operand.hbm [shape: f32[1,256], index: 5, kind: input, shape index: {}]
  %s6 = inlined_call_operand.hbm [shape: f32[1,256], index: 6, kind: input, shape index: {}]
  %s7 = inlined_call_operand.hbm [shape: bf16[16,2,8,128], index: 7, kind: output, shape index: {}]
  %s8 = sld [smem:[#allocation0]]
  $region89: #{low_resolution_branch.3} parent=0
    _
  %s10 = ssub.s32 1, %s8
  %s11 = scalar_select 0, %s10, %s8
  $region1: #{low_resolution_branch.3} parent=0
    #allocation2 [shape = 'u8[147456]{0}', space=vmem, size = 0x24000, scoped, tag = 'input window, operand 0']
    #allocation3 [shape = 's32[2]{0}', space=sflag, size = 0x8, scoped, tag = 'scoped memory for low_resolution_branch.3']
    #allocation4 [shape = 's32[2]{0}', space=sflag, size = 0x8, scoped, tag = 'scoped memory for low_resolution_branch.3']
    #allocation5 [shape = 'u8[196608]{0}', space=vmem, size = 0x30000, scoped, tag = 'input window, operand 1, single buffered']
    #allocation6 [shape = 's32[1]{0}', space=sflag, size = 0x4, scoped, tag = 'scoped memory for low_resolution_branch.3']
    #allocation7 [shape = 'u8[512]{0}', space=vmem, size = 0x400, scoped, tag = 'input window, operand 2, single buffered']
    #allocation8 [shape = 'u8[512]{0}', space=vmem, size = 0x400, scoped, tag = 'input window, operand 3, single buffered']
    #allocation9 [shape = 's32[1]{0}', space=sflag, size = 0x4, scoped, tag = 'scoped memory for low_resolution_branch.3']
    #allocation10 [shape = 'u8[32768]{0}', space=vmem, size = 0x8000, scoped, tag = 'input window, operand 4, single buffered']
    #allocation11 [shape = 'u8[1024]{0}', space=vmem, size = 0x400, scoped, tag = 'input window, operand 5, single buffered']
    #allocation12 [shape = 's32[1]{0}', space=sflag, size = 0x4, scoped, tag = 'scoped memory for low_resolution_branch.3']
    #allocation13 [shape = 'u8[1024]{0}', space=vmem, size = 0x400, scoped, tag = 'input window, operand 6, single buffered']
    #allocation14 [shape = 'u8[65536]{0}', space=vmem, size = 0x10000, scoped, tag = 'output window, operand 0']
    %12 = vsyncpa [#allocation3], 0
    %s13 = scalar_lea.sflag [#allocation3], 1
    %14 = vsyncpa %s13, 0
    %15 = vsyncpa [#allocation6], 0
    %16 = vsyncpa [#allocation9], 0
    %17 = vsyncpa [#allocation12], 0
    %18 = vsyncpa [#allocation4], 0
    %s19 = scalar_lea.sflag [#allocation4], 1
    %20 = vsyncpa %s19, 0
    loop: start=0, step=1, limit=4
    $region2: #{low_resolution_branch.3} parent=1 // loop_pre_header
      _
    $region3: #{low_resolution_branch.3} parent=1 // loop_header
      %s22 = sphi 0, %s26
      %p23 = scmp.ge.s32.totalorder %s22, 4
      %s32 = sphi 0, %s34
      %s35 = sphi 0, %s32
      %s36 = sphi 0, %s35
      %s52 = sphi 0, %s36
      %s56 = sphi 0, %s56
      %s58 = sphi 0, %s56
      %s59 = sphi 0, %s58
      %s73 = sphi 0, %s59
      %s77 = sphi 0, %s77
      %s79 = sphi 0, %s77
      %s80 = sphi 0, %s79
      %s94 = sphi 0, %s80
      %s98 = sphi 0, %s98
      %s100 = sphi 0, %s98
      %s101 = sphi 0, %s100
      %s115 = sphi 0, %s101
      %s119 = sphi 0, %s119
      %s121 = sphi 0, %s119
      %s122 = sphi 0, %s121
      %s136 = sphi 0, %s122
      %s140 = sphi 0, %s140
      %s142 = sphi 0, %s140
      %s143 = sphi 0, %s142
      %s157 = sphi 0, %s143
      %s161 = sphi 0, %s161
      %s163 = sphi 0, %s161
      %s164 = sphi 0, %s163
      %s178 = sphi 0, %s164
      %s184 = sphi 0, %s186
      %s187 = sphi 0, %s184
      %s188 = sphi 0, %s187
      %s204 = sphi 0, %s188
    $region4: #{low_resolution_branch.3} parent=1 // loop_header_branch
      %25 = sbr.rel (%p23) target = $region8
    $region5: #{low_resolution_branch.3} parent=1 // loop_body
      %s27 = ssub.s32 %s22, 1
      %s28 = ssub.s32 %s22, 2
      %s29 = sadd.s32 %s22, 1
      %s30 = ssub.s32 %s22, %s29
      %p31 = scmp.eq.s32.totalorder %s30, 0
      %s33 = sadd.s32 %s32, 1
      %s34 = scalar_select %p31, %s32, %s33
      %p37 = pneg %p31
      %p38 = scmp.eq.s32.totalorder %s22, 1
      %p39 = por %p37, %p38
      %p40 = scmp.ne.s32.totalorder %s32, %s35
      %p41 = scmp.eq.s32.totalorder %s22, 0
      %p42 = por %p40, %p41
      %p43 = scmp.ne.s32.totalorder %s32, %s35
      %p44 = scmp.eq.s32.totalorder %s27, 1
      %p45 = por %p43, %p44
      %p46 = scmp.ne.s32.totalorder %s35, %s36
      %p47 = scmp.eq.s32.totalorder %s27, 0
      %p48 = por %p46, %p47
      %p49 = scmp.ne.s32.totalorder %s35, %s36
      %p50 = scmp.eq.s32.totalorder %s28, 1
      %p51 = por %p49, %p50
      %p53 = scmp.ne.s32.totalorder %s36, %s52
      %p54 = scmp.eq.s32.totalorder %s28, 0
      %p55 = por %p53, %p54
      %s57 = sadd.s32 %s56, 1
      %p60 = scmp.eq.s32.totalorder %s22, 1
      %p61 = scmp.ne.s32.totalorder %s56, %s58
      %p62 = scmp.eq.s32.totalorder %s22, 0
      %p63 = por %p61, %p62
      %p64 = scmp.ne.s32.totalorder %s56, %s58
      %p65 = scmp.eq.s32.totalorder %s27, 1
      %p66 = por %p64, %p65
      %p67 = scmp.ne.s32.totalorder %s58, %s59
      %p68 = scmp.eq.s32.totalorder %s27, 0
      %p69 = por %p67, %p68
      %p70 = scmp.ne.s32.totalorder %s58, %s59
      %p71 = scmp.eq.s32.totalorder %s28, 1
      %p72 = por %p70, %p71
      %p74 = scmp.ne.s32.totalorder %s59, %s73
      %p75 = scmp.eq.s32.totalorder %s28, 0
      %p76 = por %p74, %p75
      %s78 = sadd.s32 %s77, 1
      %p81 = scmp.eq.s32.totalorder %s22, 1
      %p82 = scmp.ne.s32.totalorder %s77, %s79
      %p83 = scmp.eq.s32.totalorder %s22, 0
      %p84 = por %p82, %p83
      %p85 = scmp.ne.s32.totalorder %s77, %s79
      %p86 = scmp.eq.s32.totalorder %s27, 1
      %p87 = por %p85, %p86
      %p88 = scmp.ne.s32.totalorder %s79, %s80
      %p89 = scmp.eq.s32.totalorder %s27, 0
      %p90 = por %p88, %p89
      %p91 = scmp.ne.s32.totalorder %s79, %s80
      %p92 = scmp.eq.s32.totalorder %s28, 1
      %p93 = por %p91, %p92
      %p95 = scmp.ne.s32.totalorder %s80, %s94
      %p96 = scmp.eq.s32.totalorder %s28, 0
      %p97 = por %p95, %p96
      %s99 = sadd.s32 %s98, 1
      %p102 = scmp.eq.s32.totalorder %s22, 1
      %p103 = scmp.ne.s32.totalorder %s98, %s100
      %p104 = scmp.eq.s32.totalorder %s22, 0
      %p105 = por %p103, %p104
      %p106 = scmp.ne.s32.totalorder %s98, %s100
      %p107 = scmp.eq.s32.totalorder %s27, 1
      %p108 = por %p106, %p107
      %p109 = scmp.ne.s32.totalorder %s100, %s101
      %p110 = scmp.eq.s32.totalorder %s27, 0
      %p111 = por %p109, %p110
      %p112 = scmp.ne.s32.totalorder %s100, %s101
      %p113 = scmp.eq.s32.totalorder %s28, 1
      %p114 = por %p112, %p113
      %p116 = scmp.ne.s32.totalorder %s101, %s115
      %p117 = scmp.eq.s32.totalorder %s28, 0
      %p118 = por %p116, %p117
      %s120 = sadd.s32 %s119, 1
      %p123 = scmp.eq.s32.totalorder %s22, 1
      %p124 = scmp.ne.s32.totalorder %s119, %s121
      %p125 = scmp.eq.s32.totalorder %s22, 0
      %p126 = por %p124, %p125
      %p127 = scmp.ne.s32.totalorder %s119, %s121
      %p128 = scmp.eq.s32.totalorder %s27, 1
      %p129 = por %p127, %p128
      %p130 = scmp.ne.s32.totalorder %s121, %s122
      %p131 = scmp.eq.s32.totalorder %s27, 0
      %p132 = por %p130, %p131
      %p133 = scmp.ne.s32.totalorder %s121, %s122
      %p134 = scmp.eq.s32.totalorder %s28, 1
      %p135 = por %p133, %p134
      %p137 = scmp.ne.s32.totalorder %s122, %s136
      %p138 = scmp.eq.s32.totalorder %s28, 0
      %p139 = por %p137, %p138
      %s141 = sadd.s32 %s140, 1
      %p144 = scmp.eq.s32.totalorder %s22, 1
      %p145 = scmp.ne.s32.totalorder %s140, %s142
      %p146 = scmp.eq.s32.totalorder %s22, 0
      %p147 = por %p145, %p146
      %p148 = scmp.ne.s32.totalorder %s140, %s142
      %p149 = scmp.eq.s32.totalorder %s27, 1
      %p150 = por %p148, %p149
      %p151 = scmp.ne.s32.totalorder %s142, %s143
      %p152 = scmp.eq.s32.totalorder %s27, 0
      %p153 = por %p151, %p152
      %p154 = scmp.ne.s32.totalorder %s142, %s143
      %p155 = scmp.eq.s32.totalorder %s28, 1
      %p156 = por %p154, %p155
      %p158 = scmp.ne.s32.totalorder %s143, %s157
      %p159 = scmp.eq.s32.totalorder %s28, 0
      %p160 = por %p158, %p159
      %s162 = sadd.s32 %s161, 1
      %p165 = scmp.eq.s32.totalorder %s22, 1
      %p166 = scmp.ne.s32.totalorder %s161, %s163
      %p167 = scmp.eq.s32.totalorder %s22, 0
      %p168 = por %p166, %p167
      %p169 = scmp.ne.s32.totalorder %s161, %s163
      %p170 = scmp.eq.s32.totalorder %s27, 1
      %p171 = por %p169, %p170
      %p172 = scmp.ne.s32.totalorder %s163, %s164
      %p173 = scmp.eq.s32.totalorder %s27, 0
      %p174 = por %p172, %p173
      %p175 = scmp.ne.s32.totalorder %s163, %s164
      %p176 = scmp.eq.s32.totalorder %s28, 1
      %p177 = por %p175, %p176
      %p179 = scmp.ne.s32.totalorder %s164, %s178
      %p180 = scmp.eq.s32.totalorder %s28, 0
      %p181 = por %p179, %p180
      %s182 = ssub.s32 %s22, %s29
      %p183 = scmp.eq.s32.totalorder %s182, 0
      %s185 = sadd.s32 %s184, 1
      %s186 = scalar_select %p183, %s184, %s185
      %p189 = pneg %p183
      %p190 = scmp.eq.s32.totalorder %s22, 1
      %p191 = por %p189, %p190
      %p192 = scmp.ne.s32.totalorder %s184, %s187
      %p193 = scmp.eq.s32.totalorder %s22, 0
      %p194 = por %p192, %p193
      %p195 = scmp.ne.s32.totalorder %s184, %s187
      %p196 = scmp.eq.s32.totalorder %s27, 1
      %p197 = por %p195, %p196
      %p198 = scmp.ne.s32.totalorder %s187, %s188
      %p199 = scmp.eq.s32.totalorder %s27, 0
      %p200 = por %p198, %p199
      %p201 = scmp.ne.s32.totalorder %s187, %s188
      %p202 = scmp.eq.s32.totalorder %s28, 1
      %p203 = por %p201, %p202
      %p205 = scmp.ne.s32.totalorder %s188, %s204
      %p206 = scmp.eq.s32.totalorder %s28, 0
      %p207 = por %p205, %p206
      %p208 = scmp.le.s32.totalorder 1, %s22
      %p209 = scmp.lt.s32.totalorder %s22, 3
      %p210 = pnand %p208, %p209
      %p211 = pneg %p210
      // Predicated region
      $region9: #{low_resolution_branch.3} parent=5 // pred_check
        _
      $region10: #{low_resolution_branch.3} parent=5 // pred_check_branch
        %213 = sbr.rel (%p210) target = $region12
      $region11: #{low_resolution_branch.3} parent=5 // pred_region
        %s214 = ssub.s32 %s22, 1
        // Predicated region
        $region13: #{low_resolution_branch.3} parent=11 // pred_check
          %p215 = pneg %p69
        $region14: #{low_resolution_branch.3} parent=11 // pred_check_branch
          %217 = sbr.rel (%p215) target = $region16
        $region15: #{low_resolution_branch.3} parent=11 // pred_region
          %s219 = ssub.s32 6144, 6144
          %220 = vsyncadd [#allocation6], %s219
          %s221 = sshll.u32 [#allocation5], 4
          %s222 = int_to_ptr.vmem [resolvable:$true] %s221
          %227 = dma.hbm_to_vmem [thread:$0]  %s1, 6144, %s222, [#allocation6], 64, 64, 4
        $region16: #{low_resolution_branch.3} parent=11 // pred_fallthru
          _
        // Predicated region
        $region17: #{low_resolution_branch.3} parent=11 // pred_check
          %p228 = pneg %p90
        $region18: #{low_resolution_branch.3} parent=11 // pred_check_branch
          %230 = sbr.rel (%p228) target = $region20
        $region19: #{low_resolution_branch.3} parent=11 // pred_region
          %s232 = ssub.s32 16, 16
          %233 = vsyncadd [#allocation6], %s232
          %s235 = sshll.u32 [#allocation7], 4
          %s236 = int_to_ptr.vmem [resolvable:$true] %s235
          %238 = dma.hbm_to_vmem [thread:$0]  %s2, 16, %s236, [#allocation6]
        $region20: #{low_resolution_branch.3} parent=11 // pred_fallthru
          _
        // Predicated region
        $region21: #{low_resolution_branch.3} parent=11 // pred_check
          %p239 = pneg %p111
        $region22: #{low_resolution_branch.3} parent=11 // pred_check_branch
          %241 = sbr.rel (%p239) target = $region24
        $region23: #{low_resolution_branch.3} parent=11 // pred_region
          %s243 = ssub.s32 16, 16
          %244 = vsyncadd [#allocation9], %s243
          %s246 = sshll.u32 [#allocation8], 4
          %s247 = int_to_ptr.vmem [resolvable:$true] %s246
          %249 = dma.hbm_to_vmem [thread:$0]  %s3, 16, %s247, [#allocation9]
        $region24: #{low_resolution_branch.3} parent=11 // pred_fallthru
          _
        // Predicated region
        $region25: #{low_resolution_branch.3} parent=11 // pred_check
          %p250 = pneg %p132
        $region26: #{low_resolution_branch.3} parent=11 // pred_check_branch
          %252 = sbr.rel (%p250) target = $region28
        $region27: #{low_resolution_branch.3} parent=11 // pred_region
          %s254 = ssub.s32 1024, 1024
          %255 = vsyncadd [#allocation9], %s254
          %s256 = sshll.u32 [#allocation10], 4
          %s257 = int_to_ptr.vmem [resolvable:$true] %s256
          %262 = dma.hbm_to_vmem [thread:$0]  %s4, 1024, %s257, [#allocation9], 128, 128, 8
        $region28: #{low_resolution_branch.3} parent=11 // pred_fallthru
          _
        // Predicated region
        $region29: #{low_resolution_branch.3} parent=11 // pred_check
          %p263 = pneg %p153
        $region30: #{low_resolution_branch.3} parent=11 // pred_check_branch
          %265 = sbr.rel (%p263) target = $region32
        $region31: #{low_resolution_branch.3} parent=11 // pred_region
          %s267 = ssub.s32 32, 32
          %268 = vsyncadd [#allocation12], %s267
          %s270 = sshll.u32 [#allocation11], 4
          %s271 = int_to_ptr.vmem [resolvable:$true] %s270
          %273 = dma.hbm_to_vmem [thread:$0]  %s5, 32, %s271, [#allocation12]
        $region32: #{low_resolution_branch.3} parent=11 // pred_fallthru
          _
        // Predicated region
        $region33: #{low_resolution_branch.3} parent=11 // pred_check
          %p274 = pneg %p174
        $region34: #{low_resolution_branch.3} parent=11 // pred_check_branch
          %276 = sbr.rel (%p274) target = $region36
        $region35: #{low_resolution_branch.3} parent=11 // pred_region
          %s278 = ssub.s32 32, 32
          %279 = vsyncadd [#allocation12], %s278
          %s281 = sshll.u32 [#allocation13], 4
          %s282 = int_to_ptr.vmem [resolvable:$true] %s281
          %284 = dma.hbm_to_vmem [thread:$0]  %s6, 32, %s282, [#allocation12]
        $region36: #{low_resolution_branch.3} parent=11 // pred_fallthru
          _
      $region12: #{low_resolution_branch.3} parent=5 // pred_fallthru
        _
      %p285 = scmp.lt.s32.totalorder %s22, 2
      // Predicated region
      $region37: #{low_resolution_branch.3} parent=5 // pred_check
        %p286 = pneg %p285
      $region38: #{low_resolution_branch.3} parent=5 // pred_check_branch
        %288 = sbr.rel (%p286) target = $region40
      $region39: #{low_resolution_branch.3} parent=5 // pred_region
        // Predicated region
        $region41: #{low_resolution_branch.3} parent=39 // pred_check
          %p289 = pneg %p42
        $region42: #{low_resolution_branch.3} parent=39 // pred_check_branch
          %291 = sbr.rel (%p289) target = $region44
        $region43: #{low_resolution_branch.3} parent=39 // pred_region
          %s292 = sand.u32 %s32, 1
          %s293 = scalar_lea.sflag [#allocation3], %s292
          %s294 = sand.u32 %s32, 1
          %s295 = smul.addr %s294, 144
          %s296 = scalar_lea.vmem [#allocation2], %s295
          %s297 = smul.u32 9, %s22
          %s299 = ssub.s32 2304, 2304
          %300 = vsyncadd %s293, %s299
          %s301 = smul.addr %s297, 4
          %s302 = smul.addr %s301, 64
          %s303 = scalar_lea.hbm %s0, %s302
          %s304 = sshll.u32 %s296, 4
          %s305 = int_to_ptr.vmem [resolvable:$true] %s304
          %310 = dma.hbm_to_vmem [thread:$0]  %s303, 2304, %s305, %s293, 64, 64, 4
        $region44: #{low_resolution_branch.3} parent=39 // pred_fallthru
          _
      $region40: #{low_resolution_branch.3} parent=5 // pred_fallthru
        _
      %p311 = scmp.le.s32.totalorder 1, %s22
      %p312 = scmp.lt.s32.totalorder %s22, 3
      %p313 = pnand %p311, %p312
      %p314 = pneg %p313
      // Predicated region
      $region45: #{low_resolution_branch.3} parent=5 // pred_check
        _
      $region46: #{low_resolution_branch.3} parent=5 // pred_check_branch
        %316 = sbr.rel (%p313) target = $region48
      $region47: #{low_resolution_branch.3} parent=5 // pred_region
        %s317 = ssub.s32 %s22, 1
        %s318 = sand.u32 %s35, 1
        %s319 = scalar_lea.sflag [#allocation3], %s318
        %s320 = sand.u32 %s35, 1
        %s321 = smul.addr %s320, 144
        %s322 = scalar_lea.vmem [#allocation2], %s321
        // Predicated region
        $region49: #{low_resolution_branch.3} parent=47 // pred_check
          %p323 = pneg %p48
        $region50: #{low_resolution_branch.3} parent=47 // pred_check_branch
          %325 = sbr.rel (%p323) target = $region52
        $region51: #{low_resolution_branch.3} parent=47 // pred_region
          %326 = dma.done %s319, 2304
        $region52: #{low_resolution_branch.3} parent=47 // pred_fallthru
          _
        // Predicated region
        $region53: #{low_resolution_branch.3} parent=47 // pred_check
          %p327 = pneg %p69
        $region54: #{low_resolution_branch.3} parent=47 // pred_check_branch
          %329 = sbr.rel (%p327) target = $region56
        $region55: #{low_resolution_branch.3} parent=47 // pred_region
          %330 = dma.done [#allocation6], 6144
        $region56: #{low_resolution_branch.3} parent=47 // pred_fallthru
          _
        // Predicated region
        $region57: #{low_resolution_branch.3} parent=47 // pred_check
          %p331 = pneg %p90
        $region58: #{low_resolution_branch.3} parent=47 // pred_check_branch
          %333 = sbr.rel (%p331) target = $region60
        $region59: #{low_resolution_branch.3} parent=47 // pred_region
          %334 = dma.done [#allocation6], 16
        $region60: #{low_resolution_branch.3} parent=47 // pred_fallthru
          _
        // Predicated region
        $region61: #{low_resolution_branch.3} parent=47 // pred_check
          %p335 = pneg %p111
        $region62: #{low_resolution_branch.3} parent=47 // pred_check_branch
          %337 = sbr.rel (%p335) target = $region64
        $region63: #{low_resolution_branch.3} parent=47 // pred_region
          %338 = dma.done [#allocation9], 16
        $region64: #{low_resolution_branch.3} parent=47 // pred_fallthru
          _
        // Predicated region
        $region65: #{low_resolution_branch.3} parent=47 // pred_check
          %p339 = pneg %p132
        $region66: #{low_resolution_branch.3} parent=47 // pred_check_branch
          %341 = sbr.rel (%p339) target = $region68
        $region67: #{low_resolution_branch.3} parent=47 // pred_region
          %342 = dma.done [#allocation9], 1024
        $region68: #{low_resolution_branch.3} parent=47 // pred_fallthru
          _
        // Predicated region
        $region69: #{low_resolution_branch.3} parent=47 // pred_check
          %p343 = pneg %p153
        $region70: #{low_resolution_branch.3} parent=47 // pred_check_branch
          %345 = sbr.rel (%p343) target = $region72
        $region71: #{low_resolution_branch.3} parent=47 // pred_region
          %346 = dma.done [#allocation12], 32
        $region72: #{low_resolution_branch.3} parent=47 // pred_fallthru
          _
        // Predicated region
        $region73: #{low_resolution_branch.3} parent=47 // pred_check
          %p347 = pneg %p174
        $region74: #{low_resolution_branch.3} parent=47 // pred_check_branch
          %349 = sbr.rel (%p347) target = $region76
        $region75: #{low_resolution_branch.3} parent=47 // pred_region
          %350 = dma.done [#allocation12], 32
        $region76: #{low_resolution_branch.3} parent=47 // pred_fallthru
          _
        %s351 = sand.u32 %s35, 1
        %s352 = scalar_lea.sflag [#allocation3], %s351
        %s353 = sand.u32 %s35, 1
        %s354 = smul.addr %s353, 144
        %s355 = scalar_lea.vmem [#allocation2], %s354
        %p356 = pneg %p48
        %p357 = pneg %p45
        %p358 = pneg %p69
        %p359 = pneg %p66
        %p360 = pneg %p90
        %p361 = pneg %p87
        %p362 = pneg %p111
        %p363 = pneg %p108
        %p364 = pneg %p132
        %p365 = pneg %p129
        %p366 = pneg %p153
        %p367 = pneg %p150
        %p368 = pneg %p174
        %p369 = pneg %p171
        %p370 = pneg %p200
        %p371 = pneg %p197
        %s372 = sand.u32 %s187, 1
        %s373 = scalar_lea.sflag [#allocation4], %s372
        %s374 = sand.u32 %s187, 1
        %s375 = smul.addr %s374, 64
        %s376 = scalar_lea.vmem [#allocation14], %s375
        %s377 = smul.u32 9, %s27
        %s378 = smul.u32 8, %s27
        %v380 = vld [vmem:[%s322] sm:$0xf]
        %v381 = vld [vmem:[%s322 + $0x10] sm:$0xf]
        %v382 = vld [vmem:[%s322 + $0x20] sm:$0xf]
        %v383 = vld [vmem:[%s322 + $0x30] sm:$0xf]
        %v384 = vld [vmem:[%s322 + $0x40] sm:$0xf]
        %v385 = vld [vmem:[%s322 + $0x50] sm:$0xf]
        %v386 = vld [vmem:[%s322 + $0x60] sm:$0xf]
        %v387 = vld [vmem:[%s322 + $0x70] sm:$0xf]
        %v388 = vld [vmem:[%s322 + $0x4] sm:$0x1]
        %v389 = vld [vmem:[%s322 + $0x14] sm:$0x1]
        %v390 = vld [vmem:[%s322 + $0x24] sm:$0x1]
        %v391 = vld [vmem:[%s322 + $0x34] sm:$0x1]
        %v392 = vld [vmem:[%s322 + $0x44] sm:$0x1]
        %v393 = vld [vmem:[%s322 + $0x54] sm:$0x1]
        %v394 = vld [vmem:[%s322 + $0x64] sm:$0x1]
        %v395 = vld [vmem:[%s322 + $0x74] sm:$0x1]
        %v412 = vunpack.c.l.b16 %v380
        %v413 = vunpack.c.l.b16 %v388
        %v414 = vunpack.c.l.b16 %v381
        %v415 = vunpack.c.l.b16 %v389
        %v416 = vunpack.c.l.b16 %v382
        %v417 = vunpack.c.l.b16 %v390
        %v418 = vunpack.c.l.b16 %v383
        %v419 = vunpack.c.l.b16 %v391
        %v420 = vunpack.c.l.b16 %v384
        %v421 = vunpack.c.l.b16 %v392
        %v422 = vunpack.c.l.b16 %v385
        %v423 = vunpack.c.l.b16 %v393
        %v424 = vunpack.c.l.b16 %v386
        %v425 = vunpack.c.l.b16 %v394
        %v426 = vunpack.c.l.b16 %v387
        %v427 = vunpack.c.l.b16 %v395
        %v428 = vpack.c.b16 %v413, %v412
        %v429 = vpack.c.b16 %v415, %v414
        %v430 = vpack.c.b16 %v417, %v416
        %v431 = vpack.c.b16 %v419, %v418
        %v432 = vpack.c.b16 %v421, %v420
        %v433 = vpack.c.b16 %v423, %v422
        %v434 = vpack.c.b16 %v425, %v424
        %v435 = vpack.c.b16 %v427, %v426
        %v437 = vshrl.u32 %v428, 16
        %v439 = vshll.u32 %v428, 16
        %v441 = vrot.slane %v439, 1
        %v442 = vor.u32 %v437, %v441
        %v444 = vshrl.u32 %v429, 16
        %v446 = vshll.u32 %v429, 16
        %v448 = vrot.slane %v446, 1
        %v449 = vor.u32 %v444, %v448
        %v451 = vshrl.u32 %v430, 16
        %v453 = vshll.u32 %v430, 16
        %v455 = vrot.slane %v453, 1
        %v456 = vor.u32 %v451, %v455
        %v458 = vshrl.u32 %v431, 16
        %v460 = vshll.u32 %v431, 16
        %v462 = vrot.slane %v460, 1
        %v463 = vor.u32 %v458, %v462
        %v465 = vshrl.u32 %v432, 16
        %v467 = vshll.u32 %v432, 16
        %v469 = vrot.slane %v467, 1
        %v470 = vor.u32 %v465, %v469
        %v472 = vshrl.u32 %v433, 16
        %v474 = vshll.u32 %v433, 16
        %v476 = vrot.slane %v474, 1
        %v477 = vor.u32 %v472, %v476
        %v479 = vshrl.u32 %v434, 16
        %v481 = vshll.u32 %v434, 16
        %v483 = vrot.slane %v481, 1
        %v484 = vor.u32 %v479, %v483
        %v486 = vshrl.u32 %v435, 16
        %v488 = vshll.u32 %v435, 16
        %v490 = vrot.slane %v488, 1
        %v491 = vor.u32 %v486, %v490
        %v492 = vunpack.c.l.b16 %v442
        %v493 = vunpack.c.l.b16 %v449
        %v494 = vunpack.c.l.b16 %v456
        %v495 = vunpack.c.l.b16 %v463
        %v496 = vunpack.c.l.b16 %v470
        %v497 = vunpack.c.l.b16 %v477
        %v498 = vunpack.c.l.b16 %v484
        %v499 = vunpack.c.l.b16 %v491
        %v500 = vld [vmem:[#allocation5] sm:$0xf]
        %v501 = vld [vmem:[#allocation5 + $0x4] sm:$0xf]
        %v502 = vld [vmem:[#allocation5 + $0x8] sm:$0xf]
        %v503 = vld [vmem:[#allocation5 + $0xc] sm:$0xf]
        %v504 = vld [vmem:[#allocation5 + $0x10] sm:$0xf]
        %v505 = vld [vmem:[#allocation5 + $0x14] sm:$0xf]
        %v506 = vld [vmem:[#allocation5 + $0x18] sm:$0xf]
        %v507 = vld [vmem:[#allocation5 + $0x1c] sm:$0xf]
        %v508 = vld [vmem:[#allocation5 + $0x20] sm:$0xf]
        %v509 = vld [vmem:[#allocation5 + $0x24] sm:$0xf]
        %v510 = vld [vmem:[#allocation5 + $0x28] sm:$0xf]
        %v511 = vld [vmem:[#allocation5 + $0x2c] sm:$0xf]
        %v512 = vld [vmem:[#allocation5 + $0x30] sm:$0xf]
        %v513 = vld [vmem:[#allocation5 + $0x34] sm:$0xf]
        %v514 = vld [vmem:[#allocation5 + $0x38] sm:$0xf]
        %v515 = vld [vmem:[#allocation5 + $0x3c] sm:$0xf]
        %v516 = vld [vmem:[#allocation5 + $0x40] sm:$0xf]
        %v517 = vld [vmem:[#allocation5 + $0x44] sm:$0xf]
        %v518 = vld [vmem:[#allocation5 + $0x48] sm:$0xf]
        %v519 = vld [vmem:[#allocation5 + $0x4c] sm:$0xf]
        %v520 = vld [vmem:[#allocation5 + $0x50] sm:$0xf]
        %v521 = vld [vmem:[#allocation5 + $0x54] sm:$0xf]
        %v522 = vld [vmem:[#allocation5 + $0x58] sm:$0xf]
        %v523 = vld [vmem:[#allocation5 + $0x5c] sm:$0xf]
        %v524 = vld [vmem:[#allocation5 + $0x60] sm:$0xf]
        %v525 = vld [vmem:[#allocation5 + $0x64] sm:$0xf]
        %v526 = vld [vmem:[#allocation5 + $0x68] sm:$0xf]
        %v527 = vld [vmem:[#allocation5 + $0x6c] sm:$0xf]
        %v528 = vld [vmem:[#allocation5 + $0x70] sm:$0xf]
        %v529 = vld [vmem:[#allocation5 + $0x74] sm:$0xf]
        %v530 = vld [vmem:[#allocation5 + $0x78] sm:$0xf]
        %v531 = vld [vmem:[#allocation5 + $0x7c] sm:$0xf]
        %s532 = scalar_lea.vmem %s322, 8 [#allocation2]
        %v533 = vld [vmem:[%s532] sm:$0xf]
        %v534 = vld [vmem:[%s532 + $0x10] sm:$0xf]
        %v535 = vld [vmem:[%s532 + $0x20] sm:$0xf]
        %v536 = vld [vmem:[%s532 + $0x30] sm:$0xf]
        %v537 = vld [vmem:[%s532 + $0x40] sm:$0xf]
        %v538 = vld [vmem:[%s532 + $0x50] sm:$0xf]
        %v539 = vld [vmem:[%s532 + $0x60] sm:$0xf]
        %v540 = vld [vmem:[%s532 + $0x70] sm:$0xf]
        %v541 = vld [vmem:[%s532 + $0x4] sm:$0x1]
        %v542 = vld [vmem:[%s532 + $0x14] sm:$0x1]
        %v543 = vld [vmem:[%s532 + $0x24] sm:$0x1]
        %v544 = vld [vmem:[%s532 + $0x34] sm:$0x1]
        %v545 = vld [vmem:[%s532 + $0x44] sm:$0x1]
        %v546 = vld [vmem:[%s532 + $0x54] sm:$0x1]
        %v547 = vld [vmem:[%s532 + $0x64] sm:$0x1]
        %v548 = vld [vmem:[%s532 + $0x74] sm:$0x1]
        %v565 = vunpack.c.l.b16 %v533
        %v566 = vunpack.c.l.b16 %v541
        %v567 = vunpack.c.l.b16 %v534
        %v568 = vunpack.c.l.b16 %v542
        %v569 = vunpack.c.l.b16 %v535
        %v570 = vunpack.c.l.b16 %v543
        %v571 = vunpack.c.l.b16 %v536
        %v572 = vunpack.c.l.b16 %v544
        %v573 = vunpack.c.l.b16 %v537
        %v574 = vunpack.c.l.b16 %v545
        %v575 = vunpack.c.l.b16 %v538
        %v576 = vunpack.c.l.b16 %v546
        %v577 = vunpack.c.l.b16 %v539
        %v578 = vunpack.c.l.b16 %v547
        %v579 = vunpack.c.l.b16 %v540
        %v580 = vunpack.c.l.b16 %v548
        %v581 = vpack.c.b16 %v566, %v565
        %v582 = vpack.c.b16 %v568, %v567
        %v583 = vpack.c.b16 %v570, %v569
        %v584 = vpack.c.b16 %v572, %v571
        %v585 = vpack.c.b16 %v574, %v573
        %v586 = vpack.c.b16 %v576, %v575
        %v587 = vpack.c.b16 %v578, %v577
        %v588 = vpack.c.b16 %v580, %v579
        %v590 = vshrl.u32 %v581, 16
        %v592 = vshll.u32 %v581, 16
        %v594 = vrot.slane %v592, 1
        %v595 = vor.u32 %v590, %v594
        %v597 = vshrl.u32 %v582, 16
        %v599 = vshll.u32 %v582, 16
        %v601 = vrot.slane %v599, 1
        %v602 = vor.u32 %v597, %v601
        %v604 = vshrl.u32 %v583, 16
        %v606 = vshll.u32 %v583, 16
        %v608 = vrot.slane %v606, 1
        %v609 = vor.u32 %v604, %v608
        %v611 = vshrl.u32 %v584, 16
        %v613 = vshll.u32 %v584, 16
        %v615 = vrot.slane %v613, 1
        %v616 = vor.u32 %v611, %v615
        %v618 = vshrl.u32 %v585, 16
        %v620 = vshll.u32 %v585, 16
        %v622 = vrot.slane %v620, 1
        %v623 = vor.u32 %v618, %v622
        %v625 = vshrl.u32 %v586, 16
        %v627 = vshll.u32 %v586, 16
        %v629 = vrot.slane %v627, 1
        %v630 = vor.u32 %v625, %v629
        %v632 = vshrl.u32 %v587, 16
        %v634 = vshll.u32 %v587, 16
        %v636 = vrot.slane %v634, 1
        %v637 = vor.u32 %v632, %v636
        %v639 = vshrl.u32 %v588, 16
        %v641 = vshll.u32 %v588, 16
        %v643 = vrot.slane %v641, 1
        %v644 = vor.u32 %v639, %v643
        %v645 = vunpack.c.l.b16 %v595
        %v646 = vunpack.c.l.b16 %v602
        %v647 = vunpack.c.l.b16 %v609
        %v648 = vunpack.c.l.b16 %v616
        %v649 = vunpack.c.l.b16 %v623
        %v650 = vunpack.c.l.b16 %v630
        %v651 = vunpack.c.l.b16 %v637
        %v652 = vunpack.c.l.b16 %v644
        %s653 = scalar_lea.vmem [#allocation5], 128
        %v654 = vld [vmem:[%s653] sm:$0xf]
        %v655 = vld [vmem:[%s653 + $0x4] sm:$0xf]
        %v656 = vld [vmem:[%s653 + $0x8] sm:$0xf]
        %v657 = vld [vmem:[%s653 + $0xc] sm:$0xf]
        %v658 = vld [vmem:[%s653 + $0x10] sm:$0xf]
        %v659 = vld [vmem:[%s653 + $0x14] sm:$0xf]
        %v660 = vld [vmem:[%s653 + $0x18] sm:$0xf]
        %v661 = vld [vmem:[%s653 + $0x1c] sm:$0xf]
        %v662 = vld [vmem:[%s653 + $0x20] sm:$0xf]
        %v663 = vld [vmem:[%s653 + $0x24] sm:$0xf]
        %v664 = vld [vmem:[%s653 + $0x28] sm:$0xf]
        %v665 = vld [vmem:[%s653 + $0x2c] sm:$0xf]
        %v666 = vld [vmem:[%s653 + $0x30] sm:$0xf]
        %v667 = vld [vmem:[%s653 + $0x34] sm:$0xf]
        %v668 = vld [vmem:[%s653 + $0x38] sm:$0xf]
        %v669 = vld [vmem:[%s653 + $0x3c] sm:$0xf]
        %v670 = vld [vmem:[%s653 + $0x40] sm:$0xf]
        %v671 = vld [vmem:[%s653 + $0x44] sm:$0xf]
        %v672 = vld [vmem:[%s653 + $0x48] sm:$0xf]
        %v673 = vld [vmem:[%s653 + $0x4c] sm:$0xf]
        %v674 = vld [vmem:[%s653 + $0x50] sm:$0xf]
        %v675 = vld [vmem:[%s653 + $0x54] sm:$0xf]
        %v676 = vld [vmem:[%s653 + $0x58] sm:$0xf]
        %v677 = vld [vmem:[%s653 + $0x5c] sm:$0xf]
        %v678 = vld [vmem:[%s653 + $0x60] sm:$0xf]
        %v679 = vld [vmem:[%s653 + $0x64] sm:$0xf]
        %v680 = vld [vmem:[%s653 + $0x68] sm:$0xf]
        %v681 = vld [vmem:[%s653 + $0x6c] sm:$0xf]
        %v682 = vld [vmem:[%s653 + $0x70] sm:$0xf]
        %v683 = vld [vmem:[%s653 + $0x74] sm:$0xf]
        %v684 = vld [vmem:[%s653 + $0x78] sm:$0xf]
        %v685 = vld [vmem:[%s653 + $0x7c] sm:$0xf]
        %v686 = vpack.c.b16 %v567, %v565
        %v687 = vpack.c.b16 %v646, %v645
        %v688 = vpack.c.b16 %v571, %v569
        %v689 = vpack.c.b16 %v648, %v647
        %v690 = vpack.c.b16 %v575, %v573
        %v691 = vpack.c.b16 %v650, %v649
        %v692 = vpack.c.b16 %v579, %v577
        %v693 = vpack.c.b16 %v652, %v651
        %v734 = vunpack.c.l.b16 %v654
        %v735 = vunpack.c.l.b16 %v655
        %v736 = vunpack.c.l.b16 %v656
        %v737 = vunpack.c.l.b16 %v657
        %v738 = vunpack.c.l.b16 %v658
        %v739 = vunpack.c.l.b16 %v659
        %v740 = vunpack.c.l.b16 %v660
        %v741 = vunpack.c.l.b16 %v661
        %v742 = vunpack.c.l.b16 %v662
        %v743 = vunpack.c.l.b16 %v663
        %v744 = vunpack.c.l.b16 %v664
        %v745 = vunpack.c.l.b16 %v665
        %v746 = vunpack.c.l.b16 %v666
        %v747 = vunpack.c.l.b16 %v667
        %v748 = vunpack.c.l.b16 %v668
        %v749 = vunpack.c.l.b16 %v669
        %v750 = vunpack.c.l.b16 %v670
        %v751 = vunpack.c.l.b16 %v671
        %v752 = vunpack.c.l.b16 %v672
        %v753 = vunpack.c.l.b16 %v673
        %v754 = vunpack.c.l.b16 %v674
        %v755 = vunpack.c.l.b16 %v675
        %v756 = vunpack.c.l.b16 %v676
        %v757 = vunpack.c.l.b16 %v677
        %v758 = vunpack.c.l.b16 %v678
        %v759 = vunpack.c.l.b16 %v679
        %v760 = vunpack.c.l.b16 %v680
        %v761 = vunpack.c.l.b16 %v681
        %v762 = vunpack.c.l.b16 %v682
        %v763 = vunpack.c.l.b16 %v683
        %v764 = vunpack.c.l.b16 %v684
        %v765 = vunpack.c.l.b16 %v685
        %v766 = vpack.c.b16 %v735, %v734
        %v767 = vpack.c.b16 %v737, %v736
        %v768 = vpack.c.b16 %v739, %v738
        %v769 = vpack.c.b16 %v741, %v740
        %v770 = vpack.c.b16 %v743, %v742
        %v771 = vpack.c.b16 %v745, %v744
        %v772 = vpack.c.b16 %v747, %v746
        %v773 = vpack.c.b16 %v749, %v748
        %v774 = vpack.c.b16 %v751, %v750
        %v775 = vpack.c.b16 %v753, %v752
        %v776 = vpack.c.b16 %v755, %v754
        %v777 = vpack.c.b16 %v757, %v756
        %v778 = vpack.c.b16 %v759, %v758
        %v779 = vpack.c.b16 %v761, %v760
        %v780 = vpack.c.b16 %v763, %v762
        %v781 = vpack.c.b16 %v765, %v764
        %798 = vmatprep.subr.bf16.mxu0 0
        %799 = vmatpush1.bf16.msra.mxu0 %v766
        %800 = vmatprep.subr.bf16.mxu0 0
        %801 = vmatpush1.bf16.msra.mxu0 %v767
        %802 = vmatprep.subr.bf16.mxu0 0
        %803 = vmatpush1.bf16.msra.mxu0 %v768
        %804 = vmatprep.subr.bf16.mxu0 0
        %805 = vmatpush1.bf16.msra.mxu0 %v769
        %806 = vmatprep.subr.bf16.mxu0 0
        %807 = vmatpush1.bf16.msra.mxu0 %v770
        %808 = vmatprep.subr.bf16.mxu0 0
        %809 = vmatpush1.bf16.msra.mxu0 %v771
        %810 = vmatprep.subr.bf16.mxu0 0
        %811 = vmatpush1.bf16.msra.mxu0 %v772
        %812 = vmatprep.subr.bf16.mxu0 0
        %813 = vmatpush1.bf16.msra.mxu0 %v773
        %814 = vmatprep.subr.bf16.mxu0 0
        %815 = vmatpush1.bf16.msra.mxu0 %v774
        %816 = vmatprep.subr.bf16.mxu0 0
        %817 = vmatpush1.bf16.msra.mxu0 %v775
        %818 = vmatprep.subr.bf16.mxu0 0
        %819 = vmatpush1.bf16.msra.mxu0 %v776
        %820 = vmatprep.subr.bf16.mxu0 0
        %821 = vmatpush1.bf16.msra.mxu0 %v777
        %822 = vmatprep.subr.bf16.mxu0 0
        %823 = vmatpush1.bf16.msra.mxu0 %v778
        %824 = vmatprep.subr.bf16.mxu0 0
        %825 = vmatpush1.bf16.msra.mxu0 %v779
        %826 = vmatprep.subr.bf16.mxu0 0
        %827 = vmatpush1.bf16.msra.mxu0 %v780
        %828 = vmatprep.subr.bf16.mxu0 0
        %829 = vmatpush1.bf16.msra.mxu0 %v781
        %830 = vmatprep.mubr.bf16.mxu0 %v687
        %831 = vmatmul.mubr.bf16.gmra.mrb[0].mxu0 %v686
        %v832 = vpop.f32.mrb[0].mxu0
        %v833 = vadd.f32 0.0, %v832
        %v834 = vpop.f32.mrb[0].mxu0
        %v835 = vpop.f32.mrb[0].mxu0
        %v836 = vadd.f32 0.0, %v835
        %v837 = vpop.f32.mrb[0].mxu0
        %838 = vmatprep.mubr.bf16.mxu0 %v689
        %839 = vmatmul.mubr.bf16.gmra.mrb[0].mxu0 %v688
        %v840 = vpop.f32.mrb[0].mxu0
        %v841 = vadd.f32 0.0, %v840
        %v842 = vpop.f32.mrb[0].mxu0
        %v843 = vpop.f32.mrb[0].mxu0
        %v844 = vadd.f32 0.0, %v843
        %v845 = vpop.f32.mrb[0].mxu0
        %846 = vmatprep.mubr.bf16.mxu0 %v691
        %847 = vmatmul.mubr.bf16.gmra.mrb[0].mxu0 %v690
        %v848 = vpop.f32.mrb[0].mxu0
        %v849 = vadd.f32 0.0, %v848
        %v850 = vpop.f32.mrb[0].mxu0
        %v851 = vpop.f32.mrb[0].mxu0
        %v852 = vadd.f32 0.0, %v851
        %v853 = vpop.f32.mrb[0].mxu0
        %854 = vmatprep.mubr.bf16.mxu0 %v693
        %855 = vmatmul.mubr.bf16.gmra.mrb[0].mxu0 %v692
        %v856 = vpop.f32.mrb[0].mxu0
        %v857 = vadd.f32 0.0, %v856
        %v858 = vpop.f32.mrb[0].mxu0
        %v859 = vpop.f32.mrb[0].mxu0
        %v860 = vadd.f32 0.0, %v859
        %v861 = vpop.f32.mrb[0].mxu0
        %862 = vdwg.mxu0
        %v863 = vpack.c.b16 %v414, %v412
        %v864 = vpack.c.b16 %v493, %v492
        %v865 = vpack.c.b16 %v418, %v416
        %v866 = vpack.c.b16 %v495, %v494
        %v867 = vpack.c.b16 %v422, %v420
        %v868 = vpack.c.b16 %v497, %v496
        %v869 = vpack.c.b16 %v426, %v424
        %v870 = vpack.c.b16 %v499, %v498
        %v911 = vunpack.c.l.b16 %v500
        %v912 = vunpack.c.l.b16 %v501
        %v913 = vunpack.c.l.b16 %v502
        %v914 = vunpack.c.l.b16 %v503
        %v915 = vunpack.c.l.b16 %v504
        %v916 = vunpack.c.l.b16 %v505
        %v917 = vunpack.c.l.b16 %v506
        %v918 = vunpack.c.l.b16 %v507
        %v919 = vunpack.c.l.b16 %v508
        %v920 = vunpack.c.l.b16 %v509
        %v921 = vunpack.c.l.b16 %v510
        %v922 = vunpack.c.l.b16 %v511
        %v923 = vunpack.c.l.b16 %v512
        %v924 = vunpack.c.l.b16 %v513
        %v925 = vunpack.c.l.b16 %v514
        %v926 = vunpack.c.l.b16 %v515
        %v927 = vunpack.c.l.b16 %v516
        %v928 = vunpack.c.l.b16 %v517
        %v929 = vunpack.c.l.b16 %v518
        %v930 = vunpack.c.l.b16 %v519
        %v931 = vunpack.c.l.b16 %v520
        %v932 = vunpack.c.l.b16 %v521
        %v933 = vunpack.c.l.b16 %v522
        %v934 = vunpack.c.l.b16 %v523
        %v935 = vunpack.c.l.b16 %v524
        %v936 = vunpack.c.l.b16 %v525
        %v937 = vunpack.c.l.b16 %v526
        %v938 = vunpack.c.l.b16 %v527
        %v939 = vunpack.c.l.b16 %v528
        %v940 = vunpack.c.l.b16 %v529
        %v941 = vunpack.c.l.b16 %v530
        %v942 = vunpack.c.l.b16 %v531
        %v943 = vpack.c.b16 %v912, %v911
        %v944 = vpack.c.b16 %v914, %v913
        %v945 = vpack.c.b16 %v916, %v915
        %v946 = vpack.c.b16 %v918, %v917
        %v947 = vpack.c.b16 %v920, %v919
        %v948 = vpack.c.b16 %v922, %v921
        %v949 = vpack.c.b16 %v924, %v923
        %v950 = vpack.c.b16 %v926, %v925
        %v951 = vpack.c.b16 %v928, %v927
        %v952 = vpack.c.b16 %v930, %v929
        %v953 = vpack.c.b16 %v932, %v931
        %v954 = vpack.c.b16 %v934, %v933
        %v955 = vpack.c.b16 %v936, %v935
        %v956 = vpack.c.b16 %v938, %v937
        %v957 = vpack.c.b16 %v940, %v939
        %v958 = vpack.c.b16 %v942, %v941
        %975 = vmatprep.subr.bf16.mxu0 0
        %976 = vmatpush1.bf16.msra.mxu0 %v943
        %977 = vmatprep.subr.bf16.mxu0 0
        %978 = vmatpush1.bf16.msra.mxu0 %v944
        %979 = vmatprep.subr.bf16.mxu0 0
        %980 = vmatpush1.bf16.msra.mxu0 %v945
        %981 = vmatprep.subr.bf16.mxu0 0
        %982 = vmatpush1.bf16.msra.mxu0 %v946
        %983 = vmatprep.subr.bf16.mxu0 0
        %984 = vmatpush1.bf16.msra.mxu0 %v947
        %985 = vmatprep.subr.bf16.mxu0 0
        %986 = vmatpush1.bf16.msra.mxu0 %v948
        %987 = vmatprep.subr.bf16.mxu0 0
        %988 = vmatpush1.bf16.msra.mxu0 %v949
        %989 = vmatprep.subr.bf16.mxu0 0
        %990 = vmatpush1.bf16.msra.mxu0 %v950
        %991 = vmatprep.subr.bf16.mxu0 0
        %992 = vmatpush1.bf16.msra.mxu0 %v951
        %993 = vmatprep.subr.bf16.mxu0 0
        %994 = vmatpush1.bf16.msra.mxu0 %v952
        %995 = vmatprep.subr.bf16.mxu0 0
        %996 = vmatpush1.bf16.msra.mxu0 %v953
        %997 = vmatprep.subr.bf16.mxu0 0
        %998 = vmatpush1.bf16.msra.mxu0 %v954
        %999 = vmatprep.subr.bf16.mxu0 0
        %1000 = vmatpush1.bf16.msra.mxu0 %v955
        %1001 = vmatprep.subr.bf16.mxu0 0
        %1002 = vmatpush1.bf16.msra.mxu0 %v956
        %1003 = vmatprep.subr.bf16.mxu0 0
        %1004 = vmatpush1.bf16.msra.mxu0 %v957
        %1005 = vmatprep.subr.bf16.mxu0 0
        %1006 = vmatpush1.bf16.msra.mxu0 %v958
        %1007 = vmatprep.mubr.bf16.mxu0 %v864
        %1008 = vmatmul.mubr.bf16.gmra.mrb[0].mxu0 %v863
        %v1009 = vpop.f32.mrb[0].mxu0
        %v1010 = vadd.f32 %v833, %v1009
        %v1011 = vpop.f32.mrb[0].mxu0
        %v1012 = vpop.f32.mrb[0].mxu0
        %v1013 = vadd.f32 %v836, %v1012
        %v1014 = vpop.f32.mrb[0].mxu0
        %1015 = vmatprep.mubr.bf16.mxu0 %v866
        %1016 = vmatmul.mubr.bf16.gmra.mrb[0].mxu0 %v865
        %v1017 = vpop.f32.mrb[0].mxu0
        %v1018 = vadd.f32 %v841, %v1017
        %v1019 = vpop.f32.mrb[0].mxu0
        %v1020 = vpop.f32.mrb[0].mxu0
        %v1021 = vadd.f32 %v844, %v1020
        %v1022 = vpop.f32.mrb[0].mxu0
        %1023 = vmatprep.mubr.bf16.mxu0 %v868
        %1024 = vmatmul.mubr.bf16.gmra.mrb[0].mxu0 %v867
        %v1025 = vpop.f32.mrb[0].mxu0
        %v1026 = vadd.f32 %v849, %v1025
        %v1027 = vpop.f32.mrb[0].mxu0
        %v1028 = vpop.f32.mrb[0].mxu0
        %v1029 = vadd.f32 %v852, %v1028
        %v1030 = vpop.f32.mrb[0].mxu0
        %1031 = vmatprep.mubr.bf16.mxu0 %v870
        %1032 = vmatmul.mubr.bf16.gmra.mrb[0].mxu0 %v869
        %v1033 = vpop.f32.mrb[0].mxu0
        %v1034 = vadd.f32 %v857, %v1033
        %v1035 = vpop.f32.mrb[0].mxu0
        %v1036 = vpop.f32.mrb[0].mxu0
        %v1037 = vadd.f32 %v860, %v1036
        %v1038 = vpop.f32.mrb[0].mxu0
        %1039 = vdwg.mxu0
        %s1040 = scalar_lea.vmem %s322, 16 [#allocation2]
        %v1041 = vld [vmem:[%s1040] sm:$0xf]
        %v1042 = vld [vmem:[%s1040 + $0x10] sm:$0xf]
        %v1043 = vld [vmem:[%s1040 + $0x20] sm:$0xf]
        %v1044 = vld [vmem:[%s1040 + $0x30] sm:$0xf]
        %v1045 = vld [vmem:[%s1040 + $0x40] sm:$0xf]
        %v1046 = vld [vmem:[%s1040 + $0x50] sm:$0xf]
        %v1047 = vld [vmem:[%s1040 + $0x60] sm:$0xf]
        %v1048 = vld [vmem:[%s1040 + $0x70] sm:$0xf]
        %v1049 = vld [vmem:[%s1040 + $0x4] sm:$0x1]
        %v1050 = vld [vmem:[%s1040 + $0x14] sm:$0x1]
        %v1051 = vld [vmem:[%s1040 + $0x24] sm:$0x1]
        %v1052 = vld [vmem:[%s1040 + $0x34] sm:$0x1]
        %v1053 = vld [vmem:[%s1040 + $0x44] sm:$0x1]
        %v1054 = vld [vmem:[%s1040 + $0x54] sm:$0x1]
        %v1055 = vld [vmem:[%s1040 + $0x64] sm:$0x1]
        %v1056 = vld [vmem:[%s1040 + $0x74] sm:$0x1]
        %v1073 = vunpack.c.l.b16 %v1041
        %v1074 = vunpack.c.l.b16 %v1049
        %v1075 = vunpack.c.l.b16 %v1042
        %v1076 = vunpack.c.l.b16 %v1050
        %v1077 = vunpack.c.l.b16 %v1043
        %v1078 = vunpack.c.l.b16 %v1051
        %v1079 = vunpack.c.l.b16 %v1044
        %v1080 = vunpack.c.l.b16 %v1052
        %v1081 = vunpack.c.l.b16 %v1045
        %v1082 = vunpack.c.l.b16 %v1053
        %v1083 = vunpack.c.l.b16 %v1046
        %v1084 = vunpack.c.l.b16 %v1054
        %v1085 = vunpack.c.l.b16 %v1047
        %v1086 = vunpack.c.l.b16 %v1055
        %v1087 = vunpack.c.l.b16 %v1048
        %v1088 = vunpack.c.l.b16 %v1056
        %v1089 = vpack.c.b16 %v1074, %v1073
        %v1090 = vpack.c.b16 %v1076, %v1075
        %v1091 = vpack.c.b16 %v1078, %v1077
        %v1092 = vpack.c.b16 %v1080, %v1079
        %v1093 = vpack.c.b16 %v1082, %v1081
        %v1094 = vpack.c.b16 %v1084, %v1083
        %v1095 = vpack.c.b16 %v1086, %v1085
        %v1096 = vpack.c.b16 %v1088, %v1087
        %v1098 = vshrl.u32 %v1089, 16
        %v1100 = vshll.u32 %v1089, 16
        %v1102 = vrot.slane %v1100, 1
        %v1103 = vor.u32 %v1098, %v1102
        %v1105 = vshrl.u32 %v1090, 16
        %v1107 = vshll.u32 %v1090, 16
        %v1109 = vrot.slane %v1107, 1
        %v1110 = vor.u32 %v1105, %v1109
        %v1112 = vshrl.u32 %v1091, 16
        %v1114 = vshll.u32 %v1091, 16
        %v1116 = vrot.slane %v1114, 1
        %v1117 = vor.u32 %v1112, %v1116
        %v1119 = vshrl.u32 %v1092, 16
        %v1121 = vshll.u32 %v1092, 16
        %v1123 = vrot.slane %v1121, 1
        %v1124 = vor.u32 %v1119, %v1123
        %v1126 = vshrl.u32 %v1093, 16
        %v1128 = vshll.u32 %v1093, 16
        %v1130 = vrot.slane %v1128, 1
        %v1131 = vor.u32 %v1126, %v1130
        %v1133 = vshrl.u32 %v1094, 16
        %v1135 = vshll.u32 %v1094, 16
        %v1137 = vrot.slane %v1135, 1
        %v1138 = vor.u32 %v1133, %v1137
        %v1140 = vshrl.u32 %v1095, 16
        %v1142 = vshll.u32 %v1095, 16
        %v1144 = vrot.slane %v1142, 1
        %v1145 = vor.u32 %v1140, %v1144
        %v1147 = vshrl.u32 %v1096, 16
        %v1149 = vshll.u32 %v1096, 16
        %v1151 = vrot.slane %v1149, 1
        %v1152 = vor.u32 %v1147, %v1151
        %v1153 = vunpack.c.l.b16 %v1103
        %v1154 = vunpack.c.l.b16 %v1110
        %v1155 = vunpack.c.l.b16 %v1117
        %v1156 = vunpack.c.l.b16 %v1124
        %v1157 = vunpack.c.l.b16 %v1131
        %v1158 = vunpack.c.l.b16 %v1138
        %v1159 = vunpack.c.l.b16 %v1145
        %v1160 = vunpack.c.l.b16 %v1152
        %s1161 = scalar_lea.vmem [#allocation5], 256
        %v1162 = vld [vmem:[%s1161] sm:$0xf]
        %v1163 = vld [vmem:[%s1161 + $0x4] sm:$0xf]
        %v1164 = vld [vmem:[%s1161 + $0x8] sm:$0xf]
        %v1165 = vld [vmem:[%s1161 + $0xc] sm:$0xf]
        %v1166 = vld [vmem:[%s1161 + $0x10] sm:$0xf]
        %v1167 = vld [vmem:[%s1161 + $0x14] sm:$0xf]
        %v1168 = vld [vmem:[%s1161 + $0x18] sm:$0xf]
        %v1169 = vld [vmem:[%s1161 + $0x1c] sm:$0xf]
        %v1170 = vld [vmem:[%s1161 + $0x20] sm:$0xf]
        %v1171 = vld [vmem:[%s1161 + $0x24] sm:$0xf]
        %v1172 = vld [vmem:[%s1161 + $0x28] sm:$0xf]
        %v1173 = vld [vmem:[%s1161 + $0x2c] sm:$0xf]
        %v1174 = vld [vmem:[%s1161 + $0x30] sm:$0xf]
        %v1175 = vld [vmem:[%s1161 + $0x34] sm:$0xf]
        %v1176 = vld [vmem:[%s1161 + $0x38] sm:$0xf]
        %v1177 = vld [vmem:[%s1161 + $0x3c] sm:$0xf]
        %v1178 = vld [vmem:[%s1161 + $0x40] sm:$0xf]
        %v1179 = vld [vmem:[%s1161 + $0x44] sm:$0xf]
        %v1180 = vld [vmem:[%s1161 + $0x48] sm:$0xf]
        %v1181 = vld [vmem:[%s1161 + $0x4c] sm:$0xf]
        %v1182 = vld [vmem:[%s1161 + $0x50] sm:$0xf]
        %v1183 = vld [vmem:[%s1161 + $0x54] sm:$0xf]
        %v1184 = vld [vmem:[%s1161 + $0x58] sm:$0xf]
        %v1185 = vld [vmem:[%s1161 + $0x5c] sm:$0xf]
        %v1186 = vld [vmem:[%s1161 + $0x60] sm:$0xf]
        %v1187 = vld [vmem:[%s1161 + $0x64] sm:$0xf]
        %v1188 = vld [vmem:[%s1161 + $0x68] sm:$0xf]
        %v1189 = vld [vmem:[%s1161 + $0x6c] sm:$0xf]
        %v1190 = vld [vmem:[%s1161 + $0x70] sm:$0xf]
        %v1191 = vld [vmem:[%s1161 + $0x74] sm:$0xf]
        %v1192 = vld [vmem:[%s1161 + $0x78] sm:$0xf]
        %v1193 = vld [vmem:[%s1161 + $0x7c] sm:$0xf]
        %v1194 = vpack.c.b16 %v1075, %v1073
        %v1195 = vpack.c.b16 %v1154, %v1153
        %v1196 = vpack.c.b16 %v1079, %v1077
        %v1197 = vpack.c.b16 %v1156, %v1155
        %v1198 = vpack.c.b16 %v1083, %v1081
        %v1199 = vpack.c.b16 %v1158, %v1157
        %v1200 = vpack.c.b16 %v1087, %v1085
        %v1201 = vpack.c.b16 %v1160, %v1159
        %v1242 = vunpack.c.l.b16 %v1162
        %v1243 = vunpack.c.l.b16 %v1163
        %v1244 = vunpack.c.l.b16 %v1164
        %v1245 = vunpack.c.l.b16 %v1165
        %v1246 = vunpack.c.l.b16 %v1166
        %v1247 = vunpack.c.l.b16 %v1167
        %v1248 = vunpack.c.l.b16 %v1168
        %v1249 = vunpack.c.l.b16 %v1169
        %v1250 = vunpack.c.l.b16 %v1170
        %v1251 = vunpack.c.l.b16 %v1171
        %v1252 = vunpack.c.l.b16 %v1172
        %v1253 = vunpack.c.l.b16 %v1173
        %v1254 = vunpack.c.l.b16 %v1174
        %v1255 = vunpack.c.l.b16 %v1175
        %v1256 = vunpack.c.l.b16 %v1176
        %v1257 = vunpack.c.l.b16 %v1177
        %v1258 = vunpack.c.l.b16 %v1178
        %v1259 = vunpack.c.l.b16 %v1179
        %v1260 = vunpack.c.l.b16 %v1180
        %v1261 = vunpack.c.l.b16 %v1181
        %v1262 = vunpack.c.l.b16 %v1182
        %v1263 = vunpack.c.l.b16 %v1183
        %v1264 = vunpack.c.l.b16 %v1184
        %v1265 = vunpack.c.l.b16 %v1185
        %v1266 = vunpack.c.l.b16 %v1186
        %v1267 = vunpack.c.l.b16 %v1187
        %v1268 = vunpack.c.l.b16 %v1188
        %v1269 = vunpack.c.l.b16 %v1189
        %v1270 = vunpack.c.l.b16 %v1190
        %v1271 = vunpack.c.l.b16 %v1191
        %v1272 = vunpack.c.l.b16 %v1192
        %v1273 = vunpack.c.l.b16 %v1193
        %v1274 = vpack.c.b16 %v1243, %v1242
        %v1275 = vpack.c.b16 %v1245, %v1244
        %v1276 = vpack.c.b16 %v1247, %v1246
        %v1277 = vpack.c.b16 %v1249, %v1248
        %v1278 = vpack.c.b16 %v1251, %v1250
        %v1279 = vpack.c.b16 %v1253, %v1252
        %v1280 = vpack.c.b16 %v1255, %v1254
        %v1281 = vpack.c.b16 %v1257, %v1256
        %v1282 = vpack.c.b16 %v1259, %v1258
        %v1283 = vpack.c.b16 %v1261, %v1260
        %v1284 = vpack.c.b16 %v1263, %v1262
        %v1285 = vpack.c.b16 %v1265, %v1264
        %v1286 = vpack.c.b16 %v1267, %v1266
        %v1287 = vpack.c.b16 %v1269, %v1268
        %v1288 = vpack.c.b16 %v1271, %v1270
        %v1289 = vpack.c.b16 %v1273, %v1272
        %1306 = vmatprep.subr.bf16.mxu0 0
        %1307 = vmatpush1.bf16.msra.mxu0 %v1274
        %1308 = vmatprep.subr.bf16.mxu0 0
        %1309 = vmatpush1.bf16.msra.mxu0 %v1275
        %1310 = vmatprep.subr.bf16.mxu0 0
        %1311 = vmatpush1.bf16.msra.mxu0 %v1276
        %1312 = vmatprep.subr.bf16.mxu0 0
        %1313 = vmatpush1.bf16.msra.mxu0 %v1277
        %1314 = vmatprep.subr.bf16.mxu0 0
        %1315 = vmatpush1.bf16.msra.mxu0 %v1278
        %1316 = vmatprep.subr.bf16.mxu0 0
        %1317 = vmatpush1.bf16.msra.mxu0 %v1279
        %1318 = vmatprep.subr.bf16.mxu0 0
        %1319 = vmatpush1.bf16.msra.mxu0 %v1280
        %1320 = vmatprep.subr.bf16.mxu0 0
        %1321 = vmatpush1.bf16.msra.mxu0 %v1281
        %1322 = vmatprep.subr.bf16.mxu0 0
        %1323 = vmatpush1.bf16.msra.mxu0 %v1282
        %1324 = vmatprep.subr.bf16.mxu0 0
        %1325 = vmatpush1.bf16.msra.mxu0 %v1283
        %1326 = vmatprep.subr.bf16.mxu0 0
        %1327 = vmatpush1.bf16.msra.mxu0 %v1284
        %1328 = vmatprep.subr.bf16.mxu0 0
        %1329 = vmatpush1.bf16.msra.mxu0 %v1285
        %1330 = vmatprep.subr.bf16.mxu0 0
        %1331 = vmatpush1.bf16.msra.mxu0 %v1286
        %1332 = vmatprep.subr.bf16.mxu0 0
        %1333 = vmatpush1.bf16.msra.mxu0 %v1287
        %1334 = vmatprep.subr.bf16.mxu0 0
        %1335 = vmatpush1.bf16.msra.mxu0 %v1288
        %1336 = vmatprep.subr.bf16.mxu0 0
        %1337 = vmatpush1.bf16.msra.mxu0 %v1289
        %1338 = vmatprep.mubr.bf16.mxu0 %v1195
        %1339 = vmatmul.mubr.bf16.gmra.mrb[0].mxu0 %v1194
        %v1340 = vpop.f32.mrb[0].mxu0
        %v1341 = vadd.f32 0.0, %v1340
        %v1342 = vpop.f32.mrb[0].mxu0
        %v1343 = vpop.f32.mrb[0].mxu0
        %v1344 = vadd.f32 0.0, %v1343
        %v1345 = vpop.f32.mrb[0].mxu0
        %1346 = vmatprep.mubr.bf16.mxu0 %v1197
        %1347 = vmatmul.mubr.bf16.gmra.mrb[0].mxu0 %v1196
        %v1348 = vpop.f32.mrb[0].mxu0
        %v1349 = vadd.f32 0.0, %v1348
        %v1350 = vpop.f32.mrb[0].mxu0
        %v1351 = vpop.f32.mrb[0].mxu0
        %v1352 = vadd.f32 0.0, %v1351
        %v1353 = vpop.f32.mrb[0].mxu0
        %1354 = vmatprep.mubr.bf16.mxu0 %v1199
        %1355 = vmatmul.mubr.bf16.gmra.mrb[0].mxu0 %v1198
        %v1356 = vpop.f32.mrb[0].mxu0
        %v1357 = vadd.f32 0.0, %v1356
        %v1358 = vpop.f32.mrb[0].mxu0
        %v1359 = vpop.f32.mrb[0].mxu0
        %v1360 = vadd.f32 0.0, %v1359
        %v1361 = vpop.f32.mrb[0].mxu0
        %1362 = vmatprep.mubr.bf16.mxu0 %v1201
        %1363 = vmatmul.mubr.bf16.gmra.mrb[0].mxu0 %v1200
        %v1364 = vpop.f32.mrb[0].mxu0
        %v1365 = vadd.f32 0.0, %v1364
        %v1366 = vpop.f32.mrb[0].mxu0
        %v1367 = vpop.f32.mrb[0].mxu0
        %v1368 = vadd.f32 0.0, %v1367
        %v1369 = vpop.f32.mrb[0].mxu0
        %1370 = vdwg.mxu0
        %v1371 = vadd.f32 %v1010, %v1341
        %v1372 = vadd.f32 %v1013, %v1344
        %v1373 = vadd.f32 %v1018, %v1349
        %v1374 = vadd.f32 %v1021, %v1352
        %v1375 = vadd.f32 %v1026, %v1357
        %v1376 = vadd.f32 %v1029, %v1360
        %v1377 = vadd.f32 %v1034, %v1365
        %v1378 = vadd.f32 %v1037, %v1368
        %v1379 = vld [vmem:[#allocation7] sm:$0x1]
        %v1381 = vlaneseq
        %v1382 = vshrl.u32 %v1381, 7
        %v1383 = vsub.s32 0, %v1382
        %v1384 = vrot.slane %v1379, %v1383
        %v1386 = vmul.f32 %v1371, %v1384
        %v1387 = vmul.f32 %v1372, %v1384
        %v1388 = vmul.f32 %v1373, %v1384
        %v1389 = vmul.f32 %v1374, %v1384
        %v1390 = vmul.f32 %v1375, %v1384
        %v1391 = vmul.f32 %v1376, %v1384
        %v1392 = vmul.f32 %v1377, %v1384
        %v1393 = vmul.f32 %v1378, %v1384
        %v1394 = vld [vmem:[#allocation8] sm:$0x1]
        %v1396 = vlaneseq
        %v1397 = vshrl.u32 %v1396, 7
        %v1398 = vsub.s32 0, %v1397
        %v1399 = vrot.slane %v1394, %v1398
        %v1401 = vadd.f32 %v1386, %v1399
        %v1402 = vadd.f32 %v1387, %v1399
        %v1403 = vadd.f32 %v1388, %v1399
        %v1404 = vadd.f32 %v1389, %v1399
        %v1405 = vadd.f32 %v1390, %v1399
        %v1406 = vadd.f32 %v1391, %v1399
        %v1407 = vadd.f32 %v1392, %v1399
        %v1408 = vadd.f32 %v1393, %v1399
        %v1409 = vmax.f32 %v1401, 0.0
        %v1410 = vmax.f32 %v1402, 0.0
        %v1411 = vmax.f32 %v1403, 0.0
        %v1412 = vmax.f32 %v1404, 0.0
        %v1413 = vmax.f32 %v1405, 0.0
        %v1414 = vmax.f32 %v1406, 0.0
        %v1415 = vmax.f32 %v1407, 0.0
        %v1416 = vmax.f32 %v1408, 0.0
        %v1417 = vpack.c.bf16 %v1410, %v1409
        %v1418 = vpack.c.bf16 %v1412, %v1411
        %v1419 = vpack.c.bf16 %v1414, %v1413
        %v1420 = vpack.c.bf16 %v1416, %v1415
        %v1421 = vld [vmem:[#allocation10] sm:$0xff]
        %v1422 = vld [vmem:[#allocation10 + $0x8] sm:$0xff]
        %v1423 = vld [vmem:[#allocation10 + $0x10] sm:$0xff]
        %v1424 = vld [vmem:[#allocation10 + $0x18] sm:$0xff]
        %v1425 = vld [vmem:[#allocation10 + $0x20] sm:$0xff]
        %v1426 = vld [vmem:[#allocation10 + $0x28] sm:$0xff]
        %v1427 = vld [vmem:[#allocation10 + $0x30] sm:$0xff]
        %v1428 = vld [vmem:[#allocation10 + $0x38] sm:$0xff]
        %v1437 = vunpack.c.l.b16 %v1421
        %v1438 = vunpack.c.h.b16 %v1421
        %v1439 = vunpack.c.l.b16 %v1422
        %v1440 = vunpack.c.h.b16 %v1422
        %v1441 = vunpack.c.l.b16 %v1423
        %v1442 = vunpack.c.h.b16 %v1423
        %v1443 = vunpack.c.l.b16 %v1424
        %v1444 = vunpack.c.h.b16 %v1424
        %v1445 = vunpack.c.l.b16 %v1425
        %v1446 = vunpack.c.h.b16 %v1425
        %v1447 = vunpack.c.l.b16 %v1426
        %v1448 = vunpack.c.h.b16 %v1426
        %v1449 = vunpack.c.l.b16 %v1427
        %v1450 = vunpack.c.h.b16 %v1427
        %v1451 = vunpack.c.l.b16 %v1428
        %v1452 = vunpack.c.h.b16 %v1428
        %v1453 = vpack.c.b16 %v1439, %v1437
        %v1454 = vpack.c.b16 %v1440, %v1438
        %v1455 = vpack.c.b16 %v1443, %v1441
        %v1456 = vpack.c.b16 %v1444, %v1442
        %v1457 = vpack.c.b16 %v1447, %v1445
        %v1458 = vpack.c.b16 %v1448, %v1446
        %v1459 = vpack.c.b16 %v1451, %v1449
        %v1460 = vpack.c.b16 %v1452, %v1450
        %vm1469 = vcmask 523264
        %v1471 = vsel %vm1469, %v1417, 0
        %v1474 = vsel %vm1469, %v1418, 0
        %v1477 = vsel %vm1469, %v1419, 0
        %v1480 = vsel %vm1469, %v1420, 0
        %1482 = vmatprep.subr.bf16.mxu0 %v1454
        %1483 = vmatpush1.bf16.msra.mxu0 %v1453
        %1484 = vmatprep.subr.bf16.mxu0 %v1456
        %1485 = vmatpush1.bf16.msra.mxu0 %v1455
        %1486 = vmatprep.subr.bf16.mxu0 %v1458
        %1487 = vmatpush1.bf16.msra.mxu0 %v1457
        %1488 = vmatprep.subr.bf16.mxu0 %v1460
        %1489 = vmatpush1.bf16.msra.mxu0 %v1459
        %1490 = vmatprep.subr.bf16.mxu0 0
        %1491 = vmatpush1.bf16.msra.mxu0 0
        %1492 = vmatprep.subr.bf16.mxu0 0
        %1493 = vmatpush1.bf16.msra.mxu0 0
        %1494 = vmatprep.subr.bf16.mxu0 0
        %1495 = vmatpush1.bf16.msra.mxu0 0
        %1496 = vmatprep.subr.bf16.mxu0 0
        %1497 = vmatpush1.bf16.msra.mxu0 0
        %1498 = vmatprep.subr.bf16.mxu0 0
        %1499 = vmatpush1.bf16.msra.mxu0 0
        %1500 = vmatprep.subr.bf16.mxu0 0
        %1501 = vmatpush1.bf16.msra.mxu0 0
        %1502 = vmatprep.subr.bf16.mxu0 0
        %1503 = vmatpush1.bf16.msra.mxu0 0
        %1504 = vmatprep.subr.bf16.mxu0 0
        %1505 = vmatpush1.bf16.msra.mxu0 0
        %1506 = vmatprep.subr.bf16.mxu0 0
        %1507 = vmatpush1.bf16.msra.mxu0 0
        %1508 = vmatprep.subr.bf16.mxu0 0
        %1509 = vmatpush1.bf16.msra.mxu0 0
        %1510 = vmatprep.subr.bf16.mxu0 0
        %1511 = vmatpush1.bf16.msra.mxu0 0
        %1512 = vmatprep.subr.bf16.mxu0 0
        %1513 = vmatpush1.bf16.msra.mxu0 0
        %1514 = vmatprep.mubr.bf16.mxu0 0
        %1515 = vmatmul.mubr.bf16.gmra.mrb[0].mxu0 %v1471
        %v1516 = vpop.f32.mrb[0].mxu0
        %v1517 = vadd.f32 0.0, %v1516
        %v1518 = vpop.f32.mrb[0].mxu0
        %v1519 = vadd.f32 0.0, %v1518
        %v1520 = vpop.f32.mrb[0].mxu0
        %v1521 = vadd.f32 0.0, %v1520
        %v1522 = vpop.f32.mrb[0].mxu0
        %v1523 = vadd.f32 0.0, %v1522
        %1524 = vmatprep.mubr.bf16.mxu0 0
        %1525 = vmatmul.mubr.bf16.gmra.mrb[0].mxu0 %v1474
        %v1526 = vpop.f32.mrb[0].mxu0
        %v1527 = vadd.f32 0.0, %v1526
        %v1528 = vpop.f32.mrb[0].mxu0
        %v1529 = vadd.f32 0.0, %v1528
        %v1530 = vpop.f32.mrb[0].mxu0
        %v1531 = vadd.f32 0.0, %v1530
        %v1532 = vpop.f32.mrb[0].mxu0
        %v1533 = vadd.f32 0.0, %v1532
        %1534 = vmatprep.mubr.bf16.mxu0 0
        %1535 = vmatmul.mubr.bf16.gmra.mrb[0].mxu0 %v1477
        %v1536 = vpop.f32.mrb[0].mxu0
        %v1537 = vadd.f32 0.0, %v1536
        %v1538 = vpop.f32.mrb[0].mxu0
        %v1539 = vadd.f32 0.0, %v1538
        %v1540 = vpop.f32.mrb[0].mxu0
        %v1541 = vadd.f32 0.0, %v1540
        %v1542 = vpop.f32.mrb[0].mxu0
        %v1543 = vadd.f32 0.0, %v1542
        %1544 = vmatprep.mubr.bf16.mxu0 0
        %1545 = vmatmul.mubr.bf16.gmra.mrb[0].mxu0 %v1480
        %v1546 = vpop.f32.mrb[0].mxu0
        %v1547 = vadd.f32 0.0, %v1546
        %v1548 = vpop.f32.mrb[0].mxu0
        %v1549 = vadd.f32 0.0, %v1548
        %v1550 = vpop.f32.mrb[0].mxu0
        %v1551 = vadd.f32 0.0, %v1550
        %v1552 = vpop.f32.mrb[0].mxu0
        %v1553 = vadd.f32 0.0, %v1552
        %1554 = vdwg.mxu0
        %v1555 = vld [vmem:[#allocation11] sm:$0x3]
        %v1557 = vlaneseq
        %v1558 = vshrl.u32 %v1557, 7
        %v1559 = vsub.s32 0, %v1558
        %v1560 = vrot.slane %v1555, %v1559
        %v1561 = vlaneseq
        %v1562 = vshrl.u32 %v1561, 7
        %v1563 = vsub.s32 1, %v1562
        %v1564 = vrot.slane %v1555, %v1563
        %v1567 = vmul.f32 %v1517, %v1560
        %v1568 = vmul.f32 %v1519, %v1564
        %v1569 = vmul.f32 %v1521, %v1560
        %v1570 = vmul.f32 %v1523, %v1564
        %v1571 = vmul.f32 %v1527, %v1560
        %v1572 = vmul.f32 %v1529, %v1564
        %v1573 = vmul.f32 %v1531, %v1560
        %v1574 = vmul.f32 %v1533, %v1564
        %v1575 = vmul.f32 %v1537, %v1560
        %v1576 = vmul.f32 %v1539, %v1564
        %v1577 = vmul.f32 %v1541, %v1560
        %v1578 = vmul.f32 %v1543, %v1564
        %v1579 = vmul.f32 %v1547, %v1560
        %v1580 = vmul.f32 %v1549, %v1564
        %v1581 = vmul.f32 %v1551, %v1560
        %v1582 = vmul.f32 %v1553, %v1564
        %v1583 = vld [vmem:[#allocation13] sm:$0x3]
        %v1585 = vlaneseq
        %v1586 = vshrl.u32 %v1585, 7
        %v1587 = vsub.s32 0, %v1586
        %v1588 = vrot.slane %v1583, %v1587
        %v1589 = vlaneseq
        %v1590 = vshrl.u32 %v1589, 7
        %v1591 = vsub.s32 1, %v1590
        %v1592 = vrot.slane %v1583, %v1591
        %v1595 = vadd.f32 %v1567, %v1588
        %v1596 = vadd.f32 %v1568, %v1592
        %v1597 = vadd.f32 %v1569, %v1588
        %v1598 = vadd.f32 %v1570, %v1592
        %v1599 = vadd.f32 %v1571, %v1588
        %v1600 = vadd.f32 %v1572, %v1592
        %v1601 = vadd.f32 %v1573, %v1588
        %v1602 = vadd.f32 %v1574, %v1592
        %v1603 = vadd.f32 %v1575, %v1588
        %v1604 = vadd.f32 %v1576, %v1592
        %v1605 = vadd.f32 %v1577, %v1588
        %v1606 = vadd.f32 %v1578, %v1592
        %v1607 = vadd.f32 %v1579, %v1588
        %v1608 = vadd.f32 %v1580, %v1592
        %v1609 = vadd.f32 %v1581, %v1588
        %v1610 = vadd.f32 %v1582, %v1592
        %v1611 = vmax.f32 %v1595, 0.0
        %v1612 = vmax.f32 %v1596, 0.0
        %v1613 = vmax.f32 %v1597, 0.0
        %v1614 = vmax.f32 %v1598, 0.0
        %v1615 = vmax.f32 %v1599, 0.0
        %v1616 = vmax.f32 %v1600, 0.0
        %v1617 = vmax.f32 %v1601, 0.0
        %v1618 = vmax.f32 %v1602, 0.0
        %v1619 = vmax.f32 %v1603, 0.0
        %v1620 = vmax.f32 %v1604, 0.0
        %v1621 = vmax.f32 %v1605, 0.0
        %v1622 = vmax.f32 %v1606, 0.0
        %v1623 = vmax.f32 %v1607, 0.0
        %v1624 = vmax.f32 %v1608, 0.0
        %v1625 = vmax.f32 %v1609, 0.0
        %v1626 = vmax.f32 %v1610, 0.0
        %v1627 = vpack.c.bf16 %v1611, %v1611
        %v1628 = vpack.c.bf16 %v1613, %v1613
        %v1629 = vpack.c.bf16 %v1615, %v1615
        %v1630 = vpack.c.bf16 %v1617, %v1617
        %v1631 = vpack.c.bf16 %v1619, %v1619
        %v1632 = vpack.c.bf16 %v1621, %v1621
        %v1633 = vpack.c.bf16 %v1623, %v1623
        %v1634 = vpack.c.bf16 %v1625, %v1625
        %1635 = vst [vmem:[%s376] sm:$0xf] %v1627
        %1636 = vst [vmem:[%s376 + $0x8] sm:$0xf] %v1628
        %1637 = vst [vmem:[%s376 + $0x10] sm:$0xf] %v1629
        %1638 = vst [vmem:[%s376 + $0x18] sm:$0xf] %v1630
        %1639 = vst [vmem:[%s376 + $0x20] sm:$0xf] %v1631
        %1640 = vst [vmem:[%s376 + $0x28] sm:$0xf] %v1632
        %1641 = vst [vmem:[%s376 + $0x30] sm:$0xf] %v1633
        %1642 = vst [vmem:[%s376 + $0x38] sm:$0xf] %v1634
        %v1643 = vpack.c.bf16 %v1612, %v1612
        %v1644 = vpack.c.bf16 %v1614, %v1614
        %v1645 = vpack.c.bf16 %v1616, %v1616
        %v1646 = vpack.c.bf16 %v1618, %v1618
        %v1647 = vpack.c.bf16 %v1620, %v1620
        %v1648 = vpack.c.bf16 %v1622, %v1622
        %v1649 = vpack.c.bf16 %v1624, %v1624
        %v1650 = vpack.c.bf16 %v1626, %v1626
        %s1651 = scalar_lea.vmem %s376, 4 [#allocation14]
        %1652 = vst [vmem:[%s1651] sm:$0xf] %v1643
        %1653 = vst [vmem:[%s1651 + $0x8] sm:$0xf] %v1644
        %1654 = vst [vmem:[%s1651 + $0x10] sm:$0xf] %v1645
        %1655 = vst [vmem:[%s1651 + $0x18] sm:$0xf] %v1646
        %1656 = vst [vmem:[%s1651 + $0x20] sm:$0xf] %v1647
        %1657 = vst [vmem:[%s1651 + $0x28] sm:$0xf] %v1648
        %1658 = vst [vmem:[%s1651 + $0x30] sm:$0xf] %v1649
        %1659 = vst [vmem:[%s1651 + $0x38] sm:$0xf] %v1650
        %s1660 = sand.u32 %s187, 1
        %s1661 = scalar_lea.sflag [#allocation4], %s1660
        %s1662 = sand.u32 %s187, 1
        %s1663 = smul.addr %s1662, 64
        %s1664 = scalar_lea.vmem [#allocation14], %s1663
        // Predicated region
        $region77: #{low_resolution_branch.3} parent=47 // pred_check
          %p1665 = pneg %p197
        $region78: #{low_resolution_branch.3} parent=47 // pred_check_branch
          %1667 = sbr.rel (%p1665) target = $region80
        $region79: #{low_resolution_branch.3} parent=47 // pred_region
          %s1668 = smul.u32 8, %s27
          %s1670 = ssub.s32 1024, 1024
          %1671 = vsyncadd %s1661, %s1670
          %s1672 = smul.addr %s1668, 2
          %s1673 = smul.addr %s1672, 64
          %s1674 = scalar_lea.hbm %s7, %s1673
          %s1675 = sshll.u32 %s1664, 4
          %s1676 = int_to_ptr.vmem [resolvable:$true] %s1675
          %1681 = dma.vmem_to_hbm [thread:$0]  %s1676, 1024, %s1674, %s1661, 64, 64, 4
        $region80: #{low_resolution_branch.3} parent=47 // pred_fallthru
          _
      $region48: #{low_resolution_branch.3} parent=5 // pred_fallthru
        _
      %p1682 = scmp.le.s32.totalorder 2, %s22
      // Predicated region
      $region81: #{low_resolution_branch.3} parent=5 // pred_check
        %p1683 = pneg %p1682
      $region82: #{low_resolution_branch.3} parent=5 // pred_check_branch
        %1685 = sbr.rel (%p1683) target = $region84
      $region83: #{low_resolution_branch.3} parent=5 // pred_region
        %s1686 = ssub.s32 %s22, 2
        // Predicated region
        $region85: #{low_resolution_branch.3} parent=83 // pred_check
          %p1687 = pneg %p203
        $region86: #{low_resolution_branch.3} parent=83 // pred_check_branch
          %1689 = sbr.rel (%p1687) target = $region88
        $region87: #{low_resolution_branch.3} parent=83 // pred_region
          %s1690 = sand.u32 %s188, 1
          %s1691 = scalar_lea.sflag [#allocation4], %s1690
          %s1692 = sand.u32 %s188, 1
          %s1693 = smul.addr %s1692, 64
          %s1694 = scalar_lea.vmem [#allocation14], %s1693
          %1695 = dma.done %s1691, 1024
        $region88: #{low_resolution_branch.3} parent=83 // pred_fallthru
          _
      $region84: #{low_resolution_branch.3} parent=5 // pred_fallthru
        _
    $region6: #{low_resolution_branch.3} parent=1 // loop_footer
      %s26 = sadd.s32 1, %s22
    $region7: #{low_resolution_branch.3} parent=1 // loop_footer_branch
      %21 = sbr.rel target = $region3
    $region8: #{low_resolution_branch.3} parent=1 // loop_exit
      _
    %1696 = vsyncpa [#allocation3], 1
    %s1697 = scalar_lea.sflag [#allocation3], 1
    %1698 = vsyncpa %s1697, 1
    %1699 = vsyncpa [#allocation6], 1
    %1700 = vsyncpa [#allocation9], 1
    %1701 = vsyncpa [#allocation12], 1
    %1702 = vsyncpa [#allocation4], 1
    %s1703 = scalar_lea.sflag [#allocation4], 1
    %1704 = vsyncpa %s1703, 1

</llo_original>
